<compile_context>
chip_gen: v5e
topology: v5e:2x2
jax: 0.10.0
libtpu: 0.0.40
codegen_flags: <defaults>
</compile_context>

<pallas_src>
import jax
import jax.numpy as jnp
import numpy as np
from jax.experimental import pallas as pl
from jax.experimental.pallas import tpu as pltpu


# ---------------------------------------------------------------------------
# Pallas kernel
# ---------------------------------------------------------------------------
def lstm_kernel(x_ref, lens_ref,
                w_ih0_ref, w_hh0_ref, b0_ref,
                w_ih1_ref, w_hh1_ref, b1_ref,
                w_fc_ref, b_fc_ref,
                out_ref,
                xp_ref):
    Bp = lens_ref.shape[0]
    TB, _ = x_ref.shape
    T = TB // Bp
    H = w_hh0_ref.shape[0]
    H4 = 4 * H

    # ---- hoisted layer-0 input projection: one large bf16 MXU matmul -------
    xp_ref[...] = (jnp.dot(x_ref[...], w_ih0_ref[...],
                           preferred_element_type=jnp.float32)
                   + b0_ref[...])                       # bias folded once, f32

    # ---- loop-invariant loads / broadcasts (hoisted) ------------------------
    w_hh0 = w_hh0_ref[...]                              # (H, 4H)  bf16
    w_ih1 = w_ih1_ref[...]                              # (H, 4H)  bf16
    w_hh1 = w_hh1_ref[...]                              # (H, 4H)  bf16
    b1_b = jnp.broadcast_to(b1_ref[...], (Bp, H4))      # hoisted bias broadcast
    lens_b = jnp.broadcast_to(lens_ref[...], (Bp, H))   # hoisted mask broadcast

    def gates_to_hc(gates, c_prev):
        # Two full-vreg EUP pushes (whole (Bp, 4H) tile), then slice.
        # PyTorch gate order [i, f, g, o].
        s = jax.nn.sigmoid(gates)
        th = jnp.tanh(gates)
        i = s[:, 0 * H:1 * H]
        f = s[:, 1 * H:2 * H]
        g = th[:, 2 * H:3 * H]
        o = s[:, 3 * H:4 * H]
        c_new = f * c_prev + i * g
        h_new = o * jnp.tanh(c_new)
        return h_new, c_new

    def body(t, carry):
        h0, c0, h1, c1 = carry
        mask = lens_b > t                               # (Bp, H) bool

        start = pl.multiple_of(t * Bp, 8)               # aligned sublane load
        xp_t = xp_ref[pl.ds(start, Bp), :]              # (Bp, 4H) f32

        # layer 0: recurrent matmul only (input part precomputed)
        g0 = xp_t + jnp.dot(h0.astype(jnp.bfloat16), w_hh0,
                            preferred_element_type=jnp.float32)
        h0n, c0n = gates_to_hc(g0, c0)
        h0 = jnp.where(mask, h0n, h0)
        c0 = jnp.where(mask, c0n, c0)

        # layer 1: two dots (no lane-dim concatenate)
        g1 = (jnp.dot(h0.astype(jnp.bfloat16), w_ih1,
                      preferred_element_type=jnp.float32)
              + jnp.dot(h1.astype(jnp.bfloat16), w_hh1,
                        preferred_element_type=jnp.float32)
              + b1_b)
        h1n, c1n = gates_to_hc(g1, c1)
        h1 = jnp.where(mask, h1n, h1)
        c1 = jnp.where(mask, c1n, c1)
        return h0, c0, h1, c1

    zeros = jnp.zeros((Bp, H), jnp.float32)
    unroll = True if T <= 32 else 8                     # cap unroll for long T
    _, _, h1, _ = jax.lax.fori_loop(0, T, body,
                                    (zeros, zeros, zeros, zeros),
                                    unroll=unroll)

    # fc head on the last-valid-timestep hidden of layer 1 (lane-dense store)
    out_ref[...] = (jnp.dot(h1.astype(jnp.bfloat16), w_fc_ref[...],
                            preferred_element_type=jnp.float32)
                    + b_fc_ref[...])


# ---------------------------------------------------------------------------
# Wrapper
# ---------------------------------------------------------------------------
def lstm_forward(x, lengths, params):
    """x: (B, T, input_size) float32, lengths: (B,) int32."""
    B, T, IN = x.shape
    H = params["w_hh0"].shape[0]
    OUT = params["w_fc"].shape[1]

    # pad batch to a sublane multiple (>=8) and fc output to 128 lanes
    Bp = max(8, ((B + 7) // 8) * 8)
    OUTp = max(128, ((OUT + 127) // 128) * 128)

    # (B,T,IN) -> (T,B,IN) -> pad -> flatten to (T*Bp, IN): reshape stays in
    # the wrapper (free XLA layout plumbing, no in-kernel relayout copies).
    x_tm = jnp.transpose(x, (1, 0, 2))
    x_tm = jnp.pad(x_tm, ((0, 0), (0, Bp - B), (0, 0)))
    x_flat = x_tm.reshape(T * Bp, IN).astype(jnp.bfloat16)

    lens = jnp.pad(lengths.astype(jnp.int32), (0, Bp - B)).reshape(Bp, 1)

    bf = lambda a: a.astype(jnp.bfloat16)
    w_ih0 = bf(params["w_ih0"])
    w_hh0 = bf(params["w_hh0"])
    w_ih1 = bf(params["w_ih1"])
    w_hh1 = bf(params["w_hh1"])
    w_fc = bf(jnp.pad(params["w_fc"], ((0, 0), (0, OUTp - OUT))))
    b_fc = jnp.pad(params["b_fc"], ((0, 0), (0, OUTp - OUT)))

    # rough whole-array-resident VMEM budget (+2x headroom, >=16 MiB, <=64 MiB)
    vmem_bytes = (x_flat.size * 2
                  + T * Bp * 4 * H * 4                       # xp scratch (f32)
                  + 2 * (w_ih0.size + w_hh0.size + w_ih1.size
                         + w_hh1.size + w_fc.size)
                  + 4 * (params["b0"].size + params["b1"].size + b_fc.size)
                  + 4 * Bp * OUTp + 4 * Bp)
    vmem_limit = int(min(max(2 * vmem_bytes, 16 * 1024 * 1024),
                         64 * 1024 * 1024))

    vmem = pl.BlockSpec(memory_space=pltpu.MemorySpace.VMEM)
    out = pl.pallas_call(
        lstm_kernel,
        out_shape=jax.ShapeDtypeStruct((Bp, OUTp), jnp.float32),
        in_specs=[vmem] * 10,
        out_specs=vmem,
        scratch_shapes=[pltpu.VMEM((T * Bp, 4 * H), jnp.float32)],  # x-projection
        compiler_params=pltpu.CompilerParams(vmem_limit_bytes=vmem_limit),
    )(x_flat, lens,
      w_ih0, w_hh0, params["b0"],
      w_ih1, w_hh1, params["b1"],
      w_fc, b_fc)

    return out[:B, :OUT]


# ---------------------------------------------------------------------------
# Pure-JAX reference (mirrors the PyTorch packed-LSTM forward).
# mm_dtype lets us check against both f32 numerics (loose) and the kernel's
# bf16-matmul numerics (tight).
# ---------------------------------------------------------------------------
def _lstm_cell(x_in, h, c, w_ih, w_hh, b, mm_dtype):
    H = h.shape[-1]
    gates = (jnp.dot(x_in.astype(mm_dtype), w_ih.astype(mm_dtype),
                     preferred_element_type=jnp.float32)
             + jnp.dot(h.astype(mm_dtype), w_hh.astype(mm_dtype),
                       preferred_element_type=jnp.float32)
             + b)
    i = jax.nn.sigmoid(gates[:, 0 * H:1 * H])
    f = jax.nn.sigmoid(gates[:, 1 * H:2 * H])
    g = jnp.tanh(gates[:, 2 * H:3 * H])
    o = jax.nn.sigmoid(gates[:, 3 * H:4 * H])
    c_new = f * c + i * g
    h_new = o * jnp.tanh(c_new)
    return h_new, c_new


def lstm_reference(x, lengths, params, mm_dtype=jnp.float32):
    B, T, IN = x.shape
    H = params["w_hh0"].shape[0]
    h = [jnp.zeros((B, H), jnp.float32) for _ in range(2)]
    c = [jnp.zeros((B, H), jnp.float32) for _ in range(2)]
    for t in range(T):
        mask = (lengths > t).reshape(B, 1)
        h0n, c0n = _lstm_cell(x[:, t, :], h[0], c[0],
                              params["w_ih0"], params["w_hh0"], params["b0"],
                              mm_dtype)
        h[0] = jnp.where(mask, h0n, h[0])
        c[0] = jnp.where(mask, c0n, c[0])
        h1n, c1n = _lstm_cell(h[0], h[1], c[1],
                              params["w_ih1"], params["w_hh1"], params["b1"],
                              mm_dtype)
        h[1] = jnp.where(mask, h1n, h[1])
        c[1] = jnp.where(mask, c1n, c[1])
    return (jnp.dot(h[1].astype(mm_dtype), params["w_fc"].astype(mm_dtype),
                    preferred_element_type=jnp.float32)
            + params["b_fc"])


def init_params(key, input_size, hidden_size, output_size):
    """Deterministic init mirroring nn.LSTM/nn.Linear shapes (transposed for
    right-multiplication inside the kernel)."""
    ks = jax.random.split(key, 10)
    bound = 1.0 / np.sqrt(hidden_size)

    def u(k, shape):
        return jax.random.uniform(k, shape, jnp.float32, -bound, bound)

    H4 = 4 * hidden_size
    return {
        "w_ih0": u(ks[0], (input_size, H4)),
        "w_hh0": u(ks[1], (hidden_size, H4)),
        "b0": u(ks[2], (1, H4)) + u(ks[3], (1, H4)),
        "w_ih1": u(ks[4], (hidden_size, H4)),
        "w_hh1": u(ks[5], (hidden_size, H4)),
        "b1": u(ks[6], (1, H4)) + u(ks[7], (1, H4)),
        "w_fc": u(ks[8], (hidden_size, output_size)),
        "b_fc": u(ks[9], (1, output_size)),
    }


if __name__ == "__main__":
    B, T, INPUT, HIDDEN, OUTPUT = 2, 8, 16, 32, 4

    key = jax.random.PRNGKey(0)
    kx, kp = jax.random.split(key)
    x = jax.random.normal(kx, (B, T, INPUT), jnp.float32)
    lengths = jnp.array([8, 5], dtype=jnp.int32)      # variable-length sequences
    params = init_params(kp, INPUT, HIDDEN, OUTPUT)

    out = lstm_forward(x, lengths, params)
    out = jax.block_until_ready(out)

    # Tight check vs. reference using the kernel's bf16-matmul numerics.
    ref_bf16 = lstm_reference(x, lengths, params, mm_dtype=jnp.bfloat16)
    np.testing.assert_allclose(np.asarray(out), np.asarray(ref_bf16),
                               rtol=5e-3, atol=5e-3)

    # Loose check vs. the pure-f32 PyTorch-mirroring reference (bf16 matmul
    # precision tradeoff accounted for in the tolerance).
    ref_f32 = lstm_reference(x, lengths, params, mm_dtype=jnp.float32)
    np.testing.assert_allclose(np.asarray(out), np.asarray(ref_f32),
                               rtol=5e-2, atol=5e-2)

    print("KERNEL_OK")
</pallas_src>

<mosaic_0001>
module attributes {stable_mosaic.version = 11 : i64} {
  func.func @lstm_kernel(%arg0: memref<64x16xbf16, #tpu.memory_space<vmem>>, %arg1: memref<8x1xi32, #tpu.memory_space<vmem>>, %arg2: memref<16x128xbf16, #tpu.memory_space<vmem>>, %arg3: memref<32x128xbf16, #tpu.memory_space<vmem>>, %arg4: memref<1x128xf32, #tpu.memory_space<vmem>>, %arg5: memref<32x128xbf16, #tpu.memory_space<vmem>>, %arg6: memref<32x128xbf16, #tpu.memory_space<vmem>>, %arg7: memref<1x128xf32, #tpu.memory_space<vmem>>, %arg8: memref<32x128xbf16, #tpu.memory_space<vmem>>, %arg9: memref<1x128xf32, #tpu.memory_space<vmem>>, %arg10: memref<8x128xf32, #tpu.memory_space<vmem>>, %arg11: memref<64x128xf32, #tpu.memory_space<vmem>>) attributes {dimension_semantics = [], scalar_prefetch = 0 : i64, scratch_operands = 1 : i64, tpu.core_type = #tpu.core_type<tc>} {
    %c0 = arith.constant 0 : index
    %c0_0 = arith.constant 0 : index
    %0 = vector.load %arg0[%c0, %c0_0] : memref<64x16xbf16, #tpu.memory_space<vmem>>, vector<64x16xbf16>
    %c0_1 = arith.constant 0 : index
    %c0_2 = arith.constant 0 : index
    %1 = vector.load %arg2[%c0_1, %c0_2] : memref<16x128xbf16, #tpu.memory_space<vmem>>, vector<16x128xbf16>
    %cst = arith.constant dense<0.000000e+00> : vector<64x128xf32>
    %2 = tpu.matmul %0, %1, %cst {dimension_numbers = #tpu.dot_dimension_numbers<[1], [0], [0], [1], [0, 0, 1, 1], [], []>} : vector<64x16xbf16>, vector<16x128xbf16>, vector<64x128xf32> -> vector<64x128xf32>
    %c0_3 = arith.constant 0 : index
    %c0_4 = arith.constant 0 : index
    %3 = vector.load %arg4[%c0_3, %c0_4] : memref<1x128xf32, #tpu.memory_space<vmem>>, vector<1x128xf32>
    %4 = vector.broadcast %3 : vector<1x128xf32> to vector<64x128xf32>
    %5 = arith.addf %2, %4 : vector<64x128xf32>
    %c0_5 = arith.constant 0 : index
    %c0_6 = arith.constant 0 : index
    %6 = vector.load %arg11[%c0_5, %c0_6] : memref<64x128xf32, #tpu.memory_space<vmem>>, vector<64x128xf32>
    tpu.vector_store %arg11[%c0_5, %c0_6], %5 {strides = array<i32>} : memref<64x128xf32, #tpu.memory_space<vmem>>, vector<64x128xf32>,
    %c0_7 = arith.constant 0 : index
    %c0_8 = arith.constant 0 : index
    %7 = vector.load %arg3[%c0_7, %c0_8] : memref<32x128xbf16, #tpu.memory_space<vmem>>, vector<32x128xbf16>
    %c0_9 = arith.constant 0 : index
    %c0_10 = arith.constant 0 : index
    %8 = vector.load %arg5[%c0_9, %c0_10] : memref<32x128xbf16, #tpu.memory_space<vmem>>, vector<32x128xbf16>
    %c0_11 = arith.constant 0 : index
    %c0_12 = arith.constant 0 : index
    %9 = vector.load %arg6[%c0_11, %c0_12] : memref<32x128xbf16, #tpu.memory_space<vmem>>, vector<32x128xbf16>
    %c0_13 = arith.constant 0 : index
    %c0_14 = arith.constant 0 : index
    %10 = vector.load %arg7[%c0_13, %c0_14] : memref<1x128xf32, #tpu.memory_space<vmem>>, vector<1x128xf32>
    %11 = vector.shape_cast %10 : vector<1x128xf32> to vector<1x128xf32>
    %12 = vector.broadcast %11 : vector<1x128xf32> to vector<8x128xf32>
    %c0_15 = arith.constant 0 : index
    %c0_16 = arith.constant 0 : index
    %13 = vector.load %arg1[%c0_15, %c0_16] : memref<8x1xi32, #tpu.memory_space<vmem>>, vector<8x1xi32>
    %14 = vector.shape_cast %13 : vector<8x1xi32> to vector<8x1xi32>
    %15 = vector.broadcast %14 : vector<8x1xi32> to vector<8x32xi32>
    %cst_17 = arith.constant 0.000000e+00 : f32
    %16 = vector.broadcast %cst_17 : f32 to vector<8x32xf32>
    %c0_i32 = arith.constant 0 : i32
    %17 = vector.broadcast %c0_i32 : i32 to vector<8x32xi32>
    %18 = arith.cmpi sgt, %15, %17 : vector<8x32xi32>
    %c8_i32 = arith.constant 8 : i32
    %19 = arith.muli %c0_i32, %c8_i32 : i32
    %20 = tpu.assume_multiple %19, 8 : i32
    %21 = arith.index_cast %20 : i32 to index
    %c0_18 = arith.constant 0 : index
    %22 = vector.load %arg11[%21, %c0_18] : memref<64x128xf32, #tpu.memory_space<vmem>>, vector<8x128xf32>
    %23 = arith.truncf %16 : vector<8x32xf32> to vector<8x32xbf16>
    %cst_19 = arith.constant dense<0.000000e+00> : vector<8x128xf32>
    %24 = tpu.matmul %23, %7, %cst_19 {dimension_numbers = #tpu.dot_dimension_numbers<[1], [0], [0], [1], [0, 0, 1, 1], [], []>} : vector<8x32xbf16>, vector<32x128xbf16>, vector<8x128xf32> -> vector<8x128xf32>
    %25 = arith.addf %22, %24 : vector<8x128xf32>
    %26 = arith.negf %25 : vector<8x128xf32>
    %27 = math.exp %26 : vector<8x128xf32>
    %cst_20 = arith.constant 1.000000e+00 : f32
    %28 = vector.broadcast %cst_20 : f32 to vector<8x128xf32>
    %29 = arith.addf %28, %27 : vector<8x128xf32>
    %30 = arith.divf %28, %29 : vector<8x128xf32>
    %31 = math.tanh %25 : vector<8x128xf32>
    %32 = vector.extract_strided_slice %30 {offsets = [0, 0], sizes = [8, 32], strides = [1, 1]} : vector<8x128xf32> to vector<8x32xf32>
    %33 = vector.extract_strided_slice %30 {offsets = [0, 32], sizes = [8, 32], strides = [1, 1]} : vector<8x128xf32> to vector<8x32xf32>
    %34 = vector.extract_strided_slice %31 {offsets = [0, 64], sizes = [8, 32], strides = [1, 1]} : vector<8x128xf32> to vector<8x32xf32>
    %35 = vector.extract_strided_slice %30 {offsets = [0, 96], sizes = [8, 32], strides = [1, 1]} : vector<8x128xf32> to vector<8x32xf32>
    %36 = arith.mulf %33, %16 : vector<8x32xf32>
    %37 = arith.mulf %32, %34 : vector<8x32xf32>
    %38 = arith.addf %36, %37 : vector<8x32xf32>
    %39 = math.tanh %38 : vector<8x32xf32>
    %40 = arith.mulf %35, %39 : vector<8x32xf32>
    %41 = arith.select %18, %40, %16 : vector<8x32xi1>, vector<8x32xf32>
    %42 = arith.select %18, %38, %16 : vector<8x32xi1>, vector<8x32xf32>
    %43 = arith.truncf %41 : vector<8x32xf32> to vector<8x32xbf16>
    %cst_21 = arith.constant dense<0.000000e+00> : vector<8x128xf32>
    %44 = tpu.matmul %43, %8, %cst_21 {dimension_numbers = #tpu.dot_dimension_numbers<[1], [0], [0], [1], [0, 0, 1, 1], [], []>} : vector<8x32xbf16>, vector<32x128xbf16>, vector<8x128xf32> -> vector<8x128xf32>
    %45 = arith.truncf %16 : vector<8x32xf32> to vector<8x32xbf16>
    %cst_22 = arith.constant dense<0.000000e+00> : vector<8x128xf32>
    %46 = tpu.matmul %45, %9, %cst_22 {dimension_numbers = #tpu.dot_dimension_numbers<[1], [0], [0], [1], [0, 0, 1, 1], [], []>} : vector<8x32xbf16>, vector<32x128xbf16>, vector<8x128xf32> -> vector<8x128xf32>
    %47 = arith.addf %44, %46 : vector<8x128xf32>
    %48 = arith.addf %47, %12 : vector<8x128xf32>
    %49 = arith.negf %48 : vector<8x128xf32>
    %50 = math.exp %49 : vector<8x128xf32>
    %cst_23 = arith.constant 1.000000e+00 : f32
    %51 = vector.broadcast %cst_23 : f32 to vector<8x128xf32>
    %52 = arith.addf %51, %50 : vector<8x128xf32>
    %53 = arith.divf %51, %52 : vector<8x128xf32>
    %54 = math.tanh %48 : vector<8x128xf32>
    %55 = vector.extract_strided_slice %53 {offsets = [0, 0], sizes = [8, 32], strides = [1, 1]} : vector<8x128xf32> to vector<8x32xf32>
    %56 = vector.extract_strided_slice %53 {offsets = [0, 32], sizes = [8, 32], strides = [1, 1]} : vector<8x128xf32> to vector<8x32xf32>
    %57 = vector.extract_strided_slice %54 {offsets = [0, 64], sizes = [8, 32], strides = [1, 1]} : vector<8x128xf32> to vector<8x32xf32>
    %58 = vector.extract_strided_slice %53 {offsets = [0, 96], sizes = [8, 32], strides = [1, 1]} : vector<8x128xf32> to vector<8x32xf32>
    %59 = arith.mulf %56, %16 : vector<8x32xf32>
    %60 = arith.mulf %55, %57 : vector<8x32xf32>
    %61 = arith.addf %59, %60 : vector<8x32xf32>
    %62 = math.tanh %61 : vector<8x32xf32>
    %63 = arith.mulf %58, %62 : vector<8x32xf32>
    %64 = arith.select %18, %63, %16 : vector<8x32xi1>, vector<8x32xf32>
    %65 = arith.select %18, %61, %16 : vector<8x32xi1>, vector<8x32xf32>
    %c1_i32 = arith.constant 1 : i32
    %66 = vector.broadcast %c1_i32 : i32 to vector<8x32xi32>
    %67 = arith.cmpi sgt, %15, %66 : vector<8x32xi32>
    %c8_i32_24 = arith.constant 8 : i32
    %68 = arith.muli %c1_i32, %c8_i32_24 : i32
    %69 = tpu.assume_multiple %68, 8 : i32
    %70 = arith.index_cast %69 : i32 to index
    %c0_25 = arith.constant 0 : index
    %71 = vector.load %arg11[%70, %c0_25] : memref<64x128xf32, #tpu.memory_space<vmem>>, vector<8x128xf32>
    %72 = arith.truncf %41 : vector<8x32xf32> to vector<8x32xbf16>
    %cst_26 = arith.constant dense<0.000000e+00> : vector<8x128xf32>
    %73 = tpu.matmul %72, %7, %cst_26 {dimension_numbers = #tpu.dot_dimension_numbers<[1], [0], [0], [1], [0, 0, 1, 1], [], []>} : vector<8x32xbf16>, vector<32x128xbf16>, vector<8x128xf32> -> vector<8x128xf32>
    %74 = arith.addf %71, %73 : vector<8x128xf32>
    %75 = arith.negf %74 : vector<8x128xf32>
    %76 = math.exp %75 : vector<8x128xf32>
    %cst_27 = arith.constant 1.000000e+00 : f32
    %77 = vector.broadcast %cst_27 : f32 to vector<8x128xf32>
    %78 = arith.addf %77, %76 : vector<8x128xf32>
    %79 = arith.divf %77, %78 : vector<8x128xf32>
    %80 = math.tanh %74 : vector<8x128xf32>
    %81 = vector.extract_strided_slice %79 {offsets = [0, 0], sizes = [8, 32], strides = [1, 1]} : vector<8x128xf32> to vector<8x32xf32>
    %82 = vector.extract_strided_slice %79 {offsets = [0, 32], sizes = [8, 32], strides = [1, 1]} : vector<8x128xf32> to vector<8x32xf32>
    %83 = vector.extract_strided_slice %80 {offsets = [0, 64], sizes = [8, 32], strides = [1, 1]} : vector<8x128xf32> to vector<8x32xf32>
    %84 = vector.extract_strided_slice %79 {offsets = [0, 96], sizes = [8, 32], strides = [1, 1]} : vector<8x128xf32> to vector<8x32xf32>
    %85 = arith.mulf %82, %42 : vector<8x32xf32>
    %86 = arith.mulf %81, %83 : vector<8x32xf32>
    %87 = arith.addf %85, %86 : vector<8x32xf32>
    %88 = math.tanh %87 : vector<8x32xf32>
    %89 = arith.mulf %84, %88 : vector<8x32xf32>
    %90 = arith.select %67, %89, %41 : vector<8x32xi1>, vector<8x32xf32>
    %91 = arith.select %67, %87, %42 : vector<8x32xi1>, vector<8x32xf32>
    %92 = arith.truncf %90 : vector<8x32xf32> to vector<8x32xbf16>
    %cst_28 = arith.constant dense<0.000000e+00> : vector<8x128xf32>
    %93 = tpu.matmul %92, %8, %cst_28 {dimension_numbers = #tpu.dot_dimension_numbers<[1], [0], [0], [1], [0, 0, 1, 1], [], []>} : vector<8x32xbf16>, vector<32x128xbf16>, vector<8x128xf32> -> vector<8x128xf32>
    %94 = arith.truncf %64 : vector<8x32xf32> to vector<8x32xbf16>
    %cst_29 = arith.constant dense<0.000000e+00> : vector<8x128xf32>
    %95 = tpu.matmul %94, %9, %cst_29 {dimension_numbers = #tpu.dot_dimension_numbers<[1], [0], [0], [1], [0, 0, 1, 1], [], []>} : vector<8x32xbf16>, vector<32x128xbf16>, vector<8x128xf32> -> vector<8x128xf32>
    %96 = arith.addf %93, %95 : vector<8x128xf32>
    %97 = arith.addf %96, %12 : vector<8x128xf32>
    %98 = arith.negf %97 : vector<8x128xf32>
    %99 = math.exp %98 : vector<8x128xf32>
    %cst_30 = arith.constant 1.000000e+00 : f32
    %100 = vector.broadcast %cst_30 : f32 to vector<8x128xf32>
    %101 = arith.addf %100, %99 : vector<8x128xf32>
    %102 = arith.divf %100, %101 : vector<8x128xf32>
    %103 = math.tanh %97 : vector<8x128xf32>
    %104 = vector.extract_strided_slice %102 {offsets = [0, 0], sizes = [8, 32], strides = [1, 1]} : vector<8x128xf32> to vector<8x32xf32>
    %105 = vector.extract_strided_slice %102 {offsets = [0, 32], sizes = [8, 32], strides = [1, 1]} : vector<8x128xf32> to vector<8x32xf32>
    %106 = vector.extract_strided_slice %103 {offsets = [0, 64], sizes = [8, 32], strides = [1, 1]} : vector<8x128xf32> to vector<8x32xf32>
    %107 = vector.extract_strided_slice %102 {offsets = [0, 96], sizes = [8, 32], strides = [1, 1]} : vector<8x128xf32> to vector<8x32xf32>
    %108 = arith.mulf %105, %65 : vector<8x32xf32>
    %109 = arith.mulf %104, %106 : vector<8x32xf32>
    %110 = arith.addf %108, %109 : vector<8x32xf32>
    %111 = math.tanh %110 : vector<8x32xf32>
    %112 = arith.mulf %107, %111 : vector<8x32xf32>
    %113 = arith.select %67, %112, %64 : vector<8x32xi1>, vector<8x32xf32>
    %114 = arith.select %67, %110, %65 : vector<8x32xi1>, vector<8x32xf32>
    %c2_i32 = arith.constant 2 : i32
    %115 = vector.broadcast %c2_i32 : i32 to vector<8x32xi32>
    %116 = arith.cmpi sgt, %15, %115 : vector<8x32xi32>
    %c8_i32_31 = arith.constant 8 : i32
    %117 = arith.muli %c2_i32, %c8_i32_31 : i32
    %118 = tpu.assume_multiple %117, 8 : i32
    %119 = arith.index_cast %118 : i32 to index
    %c0_32 = arith.constant 0 : index
    %120 = vector.load %arg11[%119, %c0_32] : memref<64x128xf32, #tpu.memory_space<vmem>>, vector<8x128xf32>
    %121 = arith.truncf %90 : vector<8x32xf32> to vector<8x32xbf16>
    %cst_33 = arith.constant dense<0.000000e+00> : vector<8x128xf32>
    %122 = tpu.matmul %121, %7, %cst_33 {dimension_numbers = #tpu.dot_dimension_numbers<[1], [0], [0], [1], [0, 0, 1, 1], [], []>} : vector<8x32xbf16>, vector<32x128xbf16>, vector<8x128xf32> -> vector<8x128xf32>
    %123 = arith.addf %120, %122 : vector<8x128xf32>
    %124 = arith.negf %123 : vector<8x128xf32>
    %125 = math.exp %124 : vector<8x128xf32>
    %cst_34 = arith.constant 1.000000e+00 : f32
    %126 = vector.broadcast %cst_34 : f32 to vector<8x128xf32>
    %127 = arith.addf %126, %125 : vector<8x128xf32>
    %128 = arith.divf %126, %127 : vector<8x128xf32>
    %129 = math.tanh %123 : vector<8x128xf32>
    %130 = vector.extract_strided_slice %128 {offsets = [0, 0], sizes = [8, 32], strides = [1, 1]} : vector<8x128xf32> to vector<8x32xf32>
    %131 = vector.extract_strided_slice %128 {offsets = [0, 32], sizes = [8, 32], strides = [1, 1]} : vector<8x128xf32> to vector<8x32xf32>
    %132 = vector.extract_strided_slice %129 {offsets = [0, 64], sizes = [8, 32], strides = [1, 1]} : vector<8x128xf32> to vector<8x32xf32>
    %133 = vector.extract_strided_slice %128 {offsets = [0, 96], sizes = [8, 32], strides = [1, 1]} : vector<8x128xf32> to vector<8x32xf32>
    %134 = arith.mulf %131, %91 : vector<8x32xf32>
    %135 = arith.mulf %130, %132 : vector<8x32xf32>
    %136 = arith.addf %134, %135 : vector<8x32xf32>
    %137 = math.tanh %136 : vector<8x32xf32>
    %138 = arith.mulf %133, %137 : vector<8x32xf32>
    %139 = arith.select %116, %138, %90 : vector<8x32xi1>, vector<8x32xf32>
    %140 = arith.select %116, %136, %91 : vector<8x32xi1>, vector<8x32xf32>
    %141 = arith.truncf %139 : vector<8x32xf32> to vector<8x32xbf16>
    %cst_35 = arith.constant dense<0.000000e+00> : vector<8x128xf32>
    %142 = tpu.matmul %141, %8, %cst_35 {dimension_numbers = #tpu.dot_dimension_numbers<[1], [0], [0], [1], [0, 0, 1, 1], [], []>} : vector<8x32xbf16>, vector<32x128xbf16>, vector<8x128xf32> -> vector<8x128xf32>
    %143 = arith.truncf %113 : vector<8x32xf32> to vector<8x32xbf16>
    %cst_36 = arith.constant dense<0.000000e+00> : vector<8x128xf32>
    %144 = tpu.matmul %143, %9, %cst_36 {dimension_numbers = #tpu.dot_dimension_numbers<[1], [0], [0], [1], [0, 0, 1, 1], [], []>} : vector<8x32xbf16>, vector<32x128xbf16>, vector<8x128xf32> -> vector<8x128xf32>
    %145 = arith.addf %142, %144 : vector<8x128xf32>
    %146 = arith.addf %145, %12 : vector<8x128xf32>
    %147 = arith.negf %146 : vector<8x128xf32>
    %148 = math.exp %147 : vector<8x128xf32>
    %cst_37 = arith.constant 1.000000e+00 : f32
    %149 = vector.broadcast %cst_37 : f32 to vector<8x128xf32>
    %150 = arith.addf %149, %148 : vector<8x128xf32>
    %151 = arith.divf %149, %150 : vector<8x128xf32>
    %152 = math.tanh %146 : vector<8x128xf32>
    %153 = vector.extract_strided_slice %151 {offsets = [0, 0], sizes = [8, 32], strides = [1, 1]} : vector<8x128xf32> to vector<8x32xf32>
    %154 = vector.extract_strided_slice %151 {offsets = [0, 32], sizes = [8, 32], strides = [1, 1]} : vector<8x128xf32> to vector<8x32xf32>
    %155 = vector.extract_strided_slice %152 {offsets = [0, 64], sizes = [8, 32], strides = [1, 1]} : vector<8x128xf32> to vector<8x32xf32>
    %156 = vector.extract_strided_slice %151 {offsets = [0, 96], sizes = [8, 32], strides = [1, 1]} : vector<8x128xf32> to vector<8x32xf32>
    %157 = arith.mulf %154, %114 : vector<8x32xf32>
    %158 = arith.mulf %153, %155 : vector<8x32xf32>
    %159 = arith.addf %157, %158 : vector<8x32xf32>
    %160 = math.tanh %159 : vector<8x32xf32>
    %161 = arith.mulf %156, %160 : vector<8x32xf32>
    %162 = arith.select %116, %161, %113 : vector<8x32xi1>, vector<8x32xf32>
    %163 = arith.select %116, %159, %114 : vector<8x32xi1>, vector<8x32xf32>
    %c3_i32 = arith.constant 3 : i32
    %164 = vector.broadcast %c3_i32 : i32 to vector<8x32xi32>
    %165 = arith.cmpi sgt, %15, %164 : vector<8x32xi32>
    %c8_i32_38 = arith.constant 8 : i32
    %166 = arith.muli %c3_i32, %c8_i32_38 : i32
    %167 = tpu.assume_multiple %166, 8 : i32
    %168 = arith.index_cast %167 : i32 to index
    %c0_39 = arith.constant 0 : index
    %169 = vector.load %arg11[%168, %c0_39] : memref<64x128xf32, #tpu.memory_space<vmem>>, vector<8x128xf32>
    %170 = arith.truncf %139 : vector<8x32xf32> to vector<8x32xbf16>
    %cst_40 = arith.constant dense<0.000000e+00> : vector<8x128xf32>
    %171 = tpu.matmul %170, %7, %cst_40 {dimension_numbers = #tpu.dot_dimension_numbers<[1], [0], [0], [1], [0, 0, 1, 1], [], []>} : vector<8x32xbf16>, vector<32x128xbf16>, vector<8x128xf32> -> vector<8x128xf32>
    %172 = arith.addf %169, %171 : vector<8x128xf32>
    %173 = arith.negf %172 : vector<8x128xf32>
    %174 = math.exp %173 : vector<8x128xf32>
    %cst_41 = arith.constant 1.000000e+00 : f32
    %175 = vector.broadcast %cst_41 : f32 to vector<8x128xf32>
    %176 = arith.addf %175, %174 : vector<8x128xf32>
    %177 = arith.divf %175, %176 : vector<8x128xf32>
    %178 = math.tanh %172 : vector<8x128xf32>
    %179 = vector.extract_strided_slice %177 {offsets = [0, 0], sizes = [8, 32], strides = [1, 1]} : vector<8x128xf32> to vector<8x32xf32>
    %180 = vector.extract_strided_slice %177 {offsets = [0, 32], sizes = [8, 32], strides = [1, 1]} : vector<8x128xf32> to vector<8x32xf32>
    %181 = vector.extract_strided_slice %178 {offsets = [0, 64], sizes = [8, 32], strides = [1, 1]} : vector<8x128xf32> to vector<8x32xf32>
    %182 = vector.extract_strided_slice %177 {offsets = [0, 96], sizes = [8, 32], strides = [1, 1]} : vector<8x128xf32> to vector<8x32xf32>
    %183 = arith.mulf %180, %140 : vector<8x32xf32>
    %184 = arith.mulf %179, %181 : vector<8x32xf32>
    %185 = arith.addf %183, %184 : vector<8x32xf32>
    %186 = math.tanh %185 : vector<8x32xf32>
    %187 = arith.mulf %182, %186 : vector<8x32xf32>
    %188 = arith.select %165, %187, %139 : vector<8x32xi1>, vector<8x32xf32>
    %189 = arith.select %165, %185, %140 : vector<8x32xi1>, vector<8x32xf32>
    %190 = arith.truncf %188 : vector<8x32xf32> to vector<8x32xbf16>
    %cst_42 = arith.constant dense<0.000000e+00> : vector<8x128xf32>
    %191 = tpu.matmul %190, %8, %cst_42 {dimension_numbers = #tpu.dot_dimension_numbers<[1], [0], [0], [1], [0, 0, 1, 1], [], []>} : vector<8x32xbf16>, vector<32x128xbf16>, vector<8x128xf32> -> vector<8x128xf32>
    %192 = arith.truncf %162 : vector<8x32xf32> to vector<8x32xbf16>
    %cst_43 = arith.constant dense<0.000000e+00> : vector<8x128xf32>
    %193 = tpu.matmul %192, %9, %cst_43 {dimension_numbers = #tpu.dot_dimension_numbers<[1], [0], [0], [1], [0, 0, 1, 1], [], []>} : vector<8x32xbf16>, vector<32x128xbf16>, vector<8x128xf32> -> vector<8x128xf32>
    %194 = arith.addf %191, %193 : vector<8x128xf32>
    %195 = arith.addf %194, %12 : vector<8x128xf32>
    %196 = arith.negf %195 : vector<8x128xf32>
    %197 = math.exp %196 : vector<8x128xf32>
    %cst_44 = arith.constant 1.000000e+00 : f32
    %198 = vector.broadcast %cst_44 : f32 to vector<8x128xf32>
    %199 = arith.addf %198, %197 : vector<8x128xf32>
    %200 = arith.divf %198, %199 : vector<8x128xf32>
    %201 = math.tanh %195 : vector<8x128xf32>
    %202 = vector.extract_strided_slice %200 {offsets = [0, 0], sizes = [8, 32], strides = [1, 1]} : vector<8x128xf32> to vector<8x32xf32>
    %203 = vector.extract_strided_slice %200 {offsets = [0, 32], sizes = [8, 32], strides = [1, 1]} : vector<8x128xf32> to vector<8x32xf32>
    %204 = vector.extract_strided_slice %201 {offsets = [0, 64], sizes = [8, 32], strides = [1, 1]} : vector<8x128xf32> to vector<8x32xf32>
    %205 = vector.extract_strided_slice %200 {offsets = [0, 96], sizes = [8, 32], strides = [1, 1]} : vector<8x128xf32> to vector<8x32xf32>
    %206 = arith.mulf %203, %163 : vector<8x32xf32>
    %207 = arith.mulf %202, %204 : vector<8x32xf32>
    %208 = arith.addf %206, %207 : vector<8x32xf32>
    %209 = math.tanh %208 : vector<8x32xf32>
    %210 = arith.mulf %205, %209 : vector<8x32xf32>
    %211 = arith.select %165, %210, %162 : vector<8x32xi1>, vector<8x32xf32>
    %212 = arith.select %165, %208, %163 : vector<8x32xi1>, vector<8x32xf32>
    %c4_i32 = arith.constant 4 : i32
    %213 = vector.broadcast %c4_i32 : i32 to vector<8x32xi32>
    %214 = arith.cmpi sgt, %15, %213 : vector<8x32xi32>
    %c8_i32_45 = arith.constant 8 : i32
    %215 = arith.muli %c4_i32, %c8_i32_45 : i32
    %216 = tpu.assume_multiple %215, 8 : i32
    %217 = arith.index_cast %216 : i32 to index
    %c0_46 = arith.constant 0 : index
    %218 = vector.load %arg11[%217, %c0_46] : memref<64x128xf32, #tpu.memory_space<vmem>>, vector<8x128xf32>
    %219 = arith.truncf %188 : vector<8x32xf32> to vector<8x32xbf16>
    %cst_47 = arith.constant dense<0.000000e+00> : vector<8x128xf32>
    %220 = tpu.matmul %219, %7, %cst_47 {dimension_numbers = #tpu.dot_dimension_numbers<[1], [0], [0], [1], [0, 0, 1, 1], [], []>} : vector<8x32xbf16>, vector<32x128xbf16>, vector<8x128xf32> -> vector<8x128xf32>
    %221 = arith.addf %218, %220 : vector<8x128xf32>
    %222 = arith.negf %221 : vector<8x128xf32>
    %223 = math.exp %222 : vector<8x128xf32>
    %cst_48 = arith.constant 1.000000e+00 : f32
    %224 = vector.broadcast %cst_48 : f32 to vector<8x128xf32>
    %225 = arith.addf %224, %223 : vector<8x128xf32>
    %226 = arith.divf %224, %225 : vector<8x128xf32>
    %227 = math.tanh %221 : vector<8x128xf32>
    %228 = vector.extract_strided_slice %226 {offsets = [0, 0], sizes = [8, 32], strides = [1, 1]} : vector<8x128xf32> to vector<8x32xf32>
    %229 = vector.extract_strided_slice %226 {offsets = [0, 32], sizes = [8, 32], strides = [1, 1]} : vector<8x128xf32> to vector<8x32xf32>
    %230 = vector.extract_strided_slice %227 {offsets = [0, 64], sizes = [8, 32], strides = [1, 1]} : vector<8x128xf32> to vector<8x32xf32>
    %231 = vector.extract_strided_slice %226 {offsets = [0, 96], sizes = [8, 32], strides = [1, 1]} : vector<8x128xf32> to vector<8x32xf32>
    %232 = arith.mulf %229, %189 : vector<8x32xf32>
    %233 = arith.mulf %228, %230 : vector<8x32xf32>
    %234 = arith.addf %232, %233 : vector<8x32xf32>
    %235 = math.tanh %234 : vector<8x32xf32>
    %236 = arith.mulf %231, %235 : vector<8x32xf32>
    %237 = arith.select %214, %236, %188 : vector<8x32xi1>, vector<8x32xf32>
    %238 = arith.select %214, %234, %189 : vector<8x32xi1>, vector<8x32xf32>
    %239 = arith.truncf %237 : vector<8x32xf32> to vector<8x32xbf16>
    %cst_49 = arith.constant dense<0.000000e+00> : vector<8x128xf32>
    %240 = tpu.matmul %239, %8, %cst_49 {dimension_numbers = #tpu.dot_dimension_numbers<[1], [0], [0], [1], [0, 0, 1, 1], [], []>} : vector<8x32xbf16>, vector<32x128xbf16>, vector<8x128xf32> -> vector<8x128xf32>
    %241 = arith.truncf %211 : vector<8x32xf32> to vector<8x32xbf16>
    %cst_50 = arith.constant dense<0.000000e+00> : vector<8x128xf32>
    %242 = tpu.matmul %241, %9, %cst_50 {dimension_numbers = #tpu.dot_dimension_numbers<[1], [0], [0], [1], [0, 0, 1, 1], [], []>} : vector<8x32xbf16>, vector<32x128xbf16>, vector<8x128xf32> -> vector<8x128xf32>
    %243 = arith.addf %240, %242 : vector<8x128xf32>
    %244 = arith.addf %243, %12 : vector<8x128xf32>
    %245 = arith.negf %244 : vector<8x128xf32>
    %246 = math.exp %245 : vector<8x128xf32>
    %cst_51 = arith.constant 1.000000e+00 : f32
    %247 = vector.broadcast %cst_51 : f32 to vector<8x128xf32>
    %248 = arith.addf %247, %246 : vector<8x128xf32>
    %249 = arith.divf %247, %248 : vector<8x128xf32>
    %250 = math.tanh %244 : vector<8x128xf32>
    %251 = vector.extract_strided_slice %249 {offsets = [0, 0], sizes = [8, 32], strides = [1, 1]} : vector<8x128xf32> to vector<8x32xf32>
    %252 = vector.extract_strided_slice %249 {offsets = [0, 32], sizes = [8, 32], strides = [1, 1]} : vector<8x128xf32> to vector<8x32xf32>
    %253 = vector.extract_strided_slice %250 {offsets = [0, 64], sizes = [8, 32], strides = [1, 1]} : vector<8x128xf32> to vector<8x32xf32>
    %254 = vector.extract_strided_slice %249 {offsets = [0, 96], sizes = [8, 32], strides = [1, 1]} : vector<8x128xf32> to vector<8x32xf32>
    %255 = arith.mulf %252, %212 : vector<8x32xf32>
    %256 = arith.mulf %251, %253 : vector<8x32xf32>
    %257 = arith.addf %255, %256 : vector<8x32xf32>
    %258 = math.tanh %257 : vector<8x32xf32>
    %259 = arith.mulf %254, %258 : vector<8x32xf32>
    %260 = arith.select %214, %259, %211 : vector<8x32xi1>, vector<8x32xf32>
    %261 = arith.select %214, %257, %212 : vector<8x32xi1>, vector<8x32xf32>
    %c5_i32 = arith.constant 5 : i32
    %262 = vector.broadcast %c5_i32 : i32 to vector<8x32xi32>
    %263 = arith.cmpi sgt, %15, %262 : vector<8x32xi32>
    %c8_i32_52 = arith.constant 8 : i32
    %264 = arith.muli %c5_i32, %c8_i32_52 : i32
    %265 = tpu.assume_multiple %264, 8 : i32
    %266 = arith.index_cast %265 : i32 to index
    %c0_53 = arith.constant 0 : index
    %267 = vector.load %arg11[%266, %c0_53] : memref<64x128xf32, #tpu.memory_space<vmem>>, vector<8x128xf32>
    %268 = arith.truncf %237 : vector<8x32xf32> to vector<8x32xbf16>
    %cst_54 = arith.constant dense<0.000000e+00> : vector<8x128xf32>
    %269 = tpu.matmul %268, %7, %cst_54 {dimension_numbers = #tpu.dot_dimension_numbers<[1], [0], [0], [1], [0, 0, 1, 1], [], []>} : vector<8x32xbf16>, vector<32x128xbf16>, vector<8x128xf32> -> vector<8x128xf32>
    %270 = arith.addf %267, %269 : vector<8x128xf32>
    %271 = arith.negf %270 : vector<8x128xf32>
    %272 = math.exp %271 : vector<8x128xf32>
    %cst_55 = arith.constant 1.000000e+00 : f32
    %273 = vector.broadcast %cst_55 : f32 to vector<8x128xf32>
    %274 = arith.addf %273, %272 : vector<8x128xf32>
    %275 = arith.divf %273, %274 : vector<8x128xf32>
    %276 = math.tanh %270 : vector<8x128xf32>
    %277 = vector.extract_strided_slice %275 {offsets = [0, 0], sizes = [8, 32], strides = [1, 1]} : vector<8x128xf32> to vector<8x32xf32>
    %278 = vector.extract_strided_slice %275 {offsets = [0, 32], sizes = [8, 32], strides = [1, 1]} : vector<8x128xf32> to vector<8x32xf32>
    %279 = vector.extract_strided_slice %276 {offsets = [0, 64], sizes = [8, 32], strides = [1, 1]} : vector<8x128xf32> to vector<8x32xf32>
    %280 = vector.extract_strided_slice %275 {offsets = [0, 96], sizes = [8, 32], strides = [1, 1]} : vector<8x128xf32> to vector<8x32xf32>
    %281 = arith.mulf %278, %238 : vector<8x32xf32>
    %282 = arith.mulf %277, %279 : vector<8x32xf32>
    %283 = arith.addf %281, %282 : vector<8x32xf32>
    %284 = math.tanh %283 : vector<8x32xf32>
    %285 = arith.mulf %280, %284 : vector<8x32xf32>
    %286 = arith.select %263, %285, %237 : vector<8x32xi1>, vector<8x32xf32>
    %287 = arith.select %263, %283, %238 : vector<8x32xi1>, vector<8x32xf32>
    %288 = arith.truncf %286 : vector<8x32xf32> to vector<8x32xbf16>
    %cst_56 = arith.constant dense<0.000000e+00> : vector<8x128xf32>
    %289 = tpu.matmul %288, %8, %cst_56 {dimension_numbers = #tpu.dot_dimension_numbers<[1], [0], [0], [1], [0, 0, 1, 1], [], []>} : vector<8x32xbf16>, vector<32x128xbf16>, vector<8x128xf32> -> vector<8x128xf32>
    %290 = arith.truncf %260 : vector<8x32xf32> to vector<8x32xbf16>
    %cst_57 = arith.constant dense<0.000000e+00> : vector<8x128xf32>
    %291 = tpu.matmul %290, %9, %cst_57 {dimension_numbers = #tpu.dot_dimension_numbers<[1], [0], [0], [1], [0, 0, 1, 1], [], []>} : vector<8x32xbf16>, vector<32x128xbf16>, vector<8x128xf32> -> vector<8x128xf32>
    %292 = arith.addf %289, %291 : vector<8x128xf32>
    %293 = arith.addf %292, %12 : vector<8x128xf32>
    %294 = arith.negf %293 : vector<8x128xf32>
    %295 = math.exp %294 : vector<8x128xf32>
    %cst_58 = arith.constant 1.000000e+00 : f32
    %296 = vector.broadcast %cst_58 : f32 to vector<8x128xf32>
    %297 = arith.addf %296, %295 : vector<8x128xf32>
    %298 = arith.divf %296, %297 : vector<8x128xf32>
    %299 = math.tanh %293 : vector<8x128xf32>
    %300 = vector.extract_strided_slice %298 {offsets = [0, 0], sizes = [8, 32], strides = [1, 1]} : vector<8x128xf32> to vector<8x32xf32>
    %301 = vector.extract_strided_slice %298 {offsets = [0, 32], sizes = [8, 32], strides = [1, 1]} : vector<8x128xf32> to vector<8x32xf32>
    %302 = vector.extract_strided_slice %299 {offsets = [0, 64], sizes = [8, 32], strides = [1, 1]} : vector<8x128xf32> to vector<8x32xf32>
    %303 = vector.extract_strided_slice %298 {offsets = [0, 96], sizes = [8, 32], strides = [1, 1]} : vector<8x128xf32> to vector<8x32xf32>
    %304 = arith.mulf %301, %261 : vector<8x32xf32>
    %305 = arith.mulf %300, %302 : vector<8x32xf32>
    %306 = arith.addf %304, %305 : vector<8x32xf32>
    %307 = math.tanh %306 : vector<8x32xf32>
    %308 = arith.mulf %303, %307 : vector<8x32xf32>
    %309 = arith.select %263, %308, %260 : vector<8x32xi1>, vector<8x32xf32>
    %310 = arith.select %263, %306, %261 : vector<8x32xi1>, vector<8x32xf32>
    %c6_i32 = arith.constant 6 : i32
    %311 = vector.broadcast %c6_i32 : i32 to vector<8x32xi32>
    %312 = arith.cmpi sgt, %15, %311 : vector<8x32xi32>
    %c8_i32_59 = arith.constant 8 : i32
    %313 = arith.muli %c6_i32, %c8_i32_59 : i32
    %314 = tpu.assume_multiple %313, 8 : i32
    %315 = arith.index_cast %314 : i32 to index
    %c0_60 = arith.constant 0 : index
    %316 = vector.load %arg11[%315, %c0_60] : memref<64x128xf32, #tpu.memory_space<vmem>>, vector<8x128xf32>
    %317 = arith.truncf %286 : vector<8x32xf32> to vector<8x32xbf16>
    %cst_61 = arith.constant dense<0.000000e+00> : vector<8x128xf32>
    %318 = tpu.matmul %317, %7, %cst_61 {dimension_numbers = #tpu.dot_dimension_numbers<[1], [0], [0], [1], [0, 0, 1, 1], [], []>} : vector<8x32xbf16>, vector<32x128xbf16>, vector<8x128xf32> -> vector<8x128xf32>
    %319 = arith.addf %316, %318 : vector<8x128xf32>
    %320 = arith.negf %319 : vector<8x128xf32>
    %321 = math.exp %320 : vector<8x128xf32>
    %cst_62 = arith.constant 1.000000e+00 : f32
    %322 = vector.broadcast %cst_62 : f32 to vector<8x128xf32>
    %323 = arith.addf %322, %321 : vector<8x128xf32>
    %324 = arith.divf %322, %323 : vector<8x128xf32>
    %325 = math.tanh %319 : vector<8x128xf32>
    %326 = vector.extract_strided_slice %324 {offsets = [0, 0], sizes = [8, 32], strides = [1, 1]} : vector<8x128xf32> to vector<8x32xf32>
    %327 = vector.extract_strided_slice %324 {offsets = [0, 32], sizes = [8, 32], strides = [1, 1]} : vector<8x128xf32> to vector<8x32xf32>
    %328 = vector.extract_strided_slice %325 {offsets = [0, 64], sizes = [8, 32], strides = [1, 1]} : vector<8x128xf32> to vector<8x32xf32>
    %329 = vector.extract_strided_slice %324 {offsets = [0, 96], sizes = [8, 32], strides = [1, 1]} : vector<8x128xf32> to vector<8x32xf32>
    %330 = arith.mulf %327, %287 : vector<8x32xf32>
    %331 = arith.mulf %326, %328 : vector<8x32xf32>
    %332 = arith.addf %330, %331 : vector<8x32xf32>
    %333 = math.tanh %332 : vector<8x32xf32>
    %334 = arith.mulf %329, %333 : vector<8x32xf32>
    %335 = arith.select %312, %334, %286 : vector<8x32xi1>, vector<8x32xf32>
    %336 = arith.select %312, %332, %287 : vector<8x32xi1>, vector<8x32xf32>
    %337 = arith.truncf %335 : vector<8x32xf32> to vector<8x32xbf16>
    %cst_63 = arith.constant dense<0.000000e+00> : vector<8x128xf32>
    %338 = tpu.matmul %337, %8, %cst_63 {dimension_numbers = #tpu.dot_dimension_numbers<[1], [0], [0], [1], [0, 0, 1, 1], [], []>} : vector<8x32xbf16>, vector<32x128xbf16>, vector<8x128xf32> -> vector<8x128xf32>
    %339 = arith.truncf %309 : vector<8x32xf32> to vector<8x32xbf16>
    %cst_64 = arith.constant dense<0.000000e+00> : vector<8x128xf32>
    %340 = tpu.matmul %339, %9, %cst_64 {dimension_numbers = #tpu.dot_dimension_numbers<[1], [0], [0], [1], [0, 0, 1, 1], [], []>} : vector<8x32xbf16>, vector<32x128xbf16>, vector<8x128xf32> -> vector<8x128xf32>
    %341 = arith.addf %338, %340 : vector<8x128xf32>
    %342 = arith.addf %341, %12 : vector<8x128xf32>
    %343 = arith.negf %342 : vector<8x128xf32>
    %344 = math.exp %343 : vector<8x128xf32>
    %cst_65 = arith.constant 1.000000e+00 : f32
    %345 = vector.broadcast %cst_65 : f32 to vector<8x128xf32>
    %346 = arith.addf %345, %344 : vector<8x128xf32>
    %347 = arith.divf %345, %346 : vector<8x128xf32>
    %348 = math.tanh %342 : vector<8x128xf32>
    %349 = vector.extract_strided_slice %347 {offsets = [0, 0], sizes = [8, 32], strides = [1, 1]} : vector<8x128xf32> to vector<8x32xf32>
    %350 = vector.extract_strided_slice %347 {offsets = [0, 32], sizes = [8, 32], strides = [1, 1]} : vector<8x128xf32> to vector<8x32xf32>
    %351 = vector.extract_strided_slice %348 {offsets = [0, 64], sizes = [8, 32], strides = [1, 1]} : vector<8x128xf32> to vector<8x32xf32>
    %352 = vector.extract_strided_slice %347 {offsets = [0, 96], sizes = [8, 32], strides = [1, 1]} : vector<8x128xf32> to vector<8x32xf32>
    %353 = arith.mulf %350, %310 : vector<8x32xf32>
    %354 = arith.mulf %349, %351 : vector<8x32xf32>
    %355 = arith.addf %353, %354 : vector<8x32xf32>
    %356 = math.tanh %355 : vector<8x32xf32>
    %357 = arith.mulf %352, %356 : vector<8x32xf32>
    %358 = arith.select %312, %357, %309 : vector<8x32xi1>, vector<8x32xf32>
    %359 = arith.select %312, %355, %310 : vector<8x32xi1>, vector<8x32xf32>
    %c7_i32 = arith.constant 7 : i32
    %360 = vector.broadcast %c7_i32 : i32 to vector<8x32xi32>
    %361 = arith.cmpi sgt, %15, %360 : vector<8x32xi32>
    %c8_i32_66 = arith.constant 8 : i32
    %362 = arith.muli %c7_i32, %c8_i32_66 : i32
    %363 = tpu.assume_multiple %362, 8 : i32
    %364 = arith.index_cast %363 : i32 to index
    %c0_67 = arith.constant 0 : index
    %365 = vector.load %arg11[%364, %c0_67] : memref<64x128xf32, #tpu.memory_space<vmem>>, vector<8x128xf32>
    %366 = arith.truncf %335 : vector<8x32xf32> to vector<8x32xbf16>
    %cst_68 = arith.constant dense<0.000000e+00> : vector<8x128xf32>
    %367 = tpu.matmul %366, %7, %cst_68 {dimension_numbers = #tpu.dot_dimension_numbers<[1], [0], [0], [1], [0, 0, 1, 1], [], []>} : vector<8x32xbf16>, vector<32x128xbf16>, vector<8x128xf32> -> vector<8x128xf32>
    %368 = arith.addf %365, %367 : vector<8x128xf32>
    %369 = arith.negf %368 : vector<8x128xf32>
    %370 = math.exp %369 : vector<8x128xf32>
    %cst_69 = arith.constant 1.000000e+00 : f32
    %371 = vector.broadcast %cst_69 : f32 to vector<8x128xf32>
    %372 = arith.addf %371, %370 : vector<8x128xf32>
    %373 = arith.divf %371, %372 : vector<8x128xf32>
    %374 = math.tanh %368 : vector<8x128xf32>
    %375 = vector.extract_strided_slice %373 {offsets = [0, 0], sizes = [8, 32], strides = [1, 1]} : vector<8x128xf32> to vector<8x32xf32>
    %376 = vector.extract_strided_slice %373 {offsets = [0, 32], sizes = [8, 32], strides = [1, 1]} : vector<8x128xf32> to vector<8x32xf32>
    %377 = vector.extract_strided_slice %374 {offsets = [0, 64], sizes = [8, 32], strides = [1, 1]} : vector<8x128xf32> to vector<8x32xf32>
    %378 = vector.extract_strided_slice %373 {offsets = [0, 96], sizes = [8, 32], strides = [1, 1]} : vector<8x128xf32> to vector<8x32xf32>
    %379 = arith.mulf %376, %336 : vector<8x32xf32>
    %380 = arith.mulf %375, %377 : vector<8x32xf32>
    %381 = arith.addf %379, %380 : vector<8x32xf32>
    %382 = math.tanh %381 : vector<8x32xf32>
    %383 = arith.mulf %378, %382 : vector<8x32xf32>
    %384 = arith.select %361, %383, %335 : vector<8x32xi1>, vector<8x32xf32>
    %385 = arith.select %361, %381, %336 : vector<8x32xi1>, vector<8x32xf32>
    %386 = arith.truncf %384 : vector<8x32xf32> to vector<8x32xbf16>
    %cst_70 = arith.constant dense<0.000000e+00> : vector<8x128xf32>
    %387 = tpu.matmul %386, %8, %cst_70 {dimension_numbers = #tpu.dot_dimension_numbers<[1], [0], [0], [1], [0, 0, 1, 1], [], []>} : vector<8x32xbf16>, vector<32x128xbf16>, vector<8x128xf32> -> vector<8x128xf32>
    %388 = arith.truncf %358 : vector<8x32xf32> to vector<8x32xbf16>
    %cst_71 = arith.constant dense<0.000000e+00> : vector<8x128xf32>
    %389 = tpu.matmul %388, %9, %cst_71 {dimension_numbers = #tpu.dot_dimension_numbers<[1], [0], [0], [1], [0, 0, 1, 1], [], []>} : vector<8x32xbf16>, vector<32x128xbf16>, vector<8x128xf32> -> vector<8x128xf32>
    %390 = arith.addf %387, %389 : vector<8x128xf32>
    %391 = arith.addf %390, %12 : vector<8x128xf32>
    %392 = arith.negf %391 : vector<8x128xf32>
    %393 = math.exp %392 : vector<8x128xf32>
    %cst_72 = arith.constant 1.000000e+00 : f32
    %394 = vector.broadcast %cst_72 : f32 to vector<8x128xf32>
    %395 = arith.addf %394, %393 : vector<8x128xf32>
    %396 = arith.divf %394, %395 : vector<8x128xf32>
    %397 = math.tanh %391 : vector<8x128xf32>
    %398 = vector.extract_strided_slice %396 {offsets = [0, 0], sizes = [8, 32], strides = [1, 1]} : vector<8x128xf32> to vector<8x32xf32>
    %399 = vector.extract_strided_slice %396 {offsets = [0, 32], sizes = [8, 32], strides = [1, 1]} : vector<8x128xf32> to vector<8x32xf32>
    %400 = vector.extract_strided_slice %397 {offsets = [0, 64], sizes = [8, 32], strides = [1, 1]} : vector<8x128xf32> to vector<8x32xf32>
    %401 = vector.extract_strided_slice %396 {offsets = [0, 96], sizes = [8, 32], strides = [1, 1]} : vector<8x128xf32> to vector<8x32xf32>
    %402 = arith.mulf %399, %359 : vector<8x32xf32>
    %403 = arith.mulf %398, %400 : vector<8x32xf32>
    %404 = arith.addf %402, %403 : vector<8x32xf32>
    %405 = math.tanh %404 : vector<8x32xf32>
    %406 = arith.mulf %401, %405 : vector<8x32xf32>
    %407 = arith.select %361, %406, %358 : vector<8x32xi1>, vector<8x32xf32>
    %408 = arith.select %361, %404, %359 : vector<8x32xi1>, vector<8x32xf32>
    %c8_i32_73 = arith.constant 8 : i32
    %409 = arith.truncf %407 : vector<8x32xf32> to vector<8x32xbf16>
    %c0_74 = arith.constant 0 : index
    %c0_75 = arith.constant 0 : index
    %410 = vector.load %arg8[%c0_74, %c0_75] : memref<32x128xbf16, #tpu.memory_space<vmem>>, vector<32x128xbf16>
    %cst_76 = arith.constant dense<0.000000e+00> : vector<8x128xf32>
    %411 = tpu.matmul %409, %410, %cst_76 {dimension_numbers = #tpu.dot_dimension_numbers<[1], [0], [0], [1], [0, 0, 1, 1], [], []>} : vector<8x32xbf16>, vector<32x128xbf16>, vector<8x128xf32> -> vector<8x128xf32>
    %c0_77 = arith.constant 0 : index
    %c0_78 = arith.constant 0 : index
    %412 = vector.load %arg9[%c0_77, %c0_78] : memref<1x128xf32, #tpu.memory_space<vmem>>, vector<1x128xf32>
    %413 = vector.broadcast %412 : vector<1x128xf32> to vector<8x128xf32>
    %414 = arith.addf %411, %413 : vector<8x128xf32>
    %c0_79 = arith.constant 0 : index
    %c0_80 = arith.constant 0 : index
    %415 = vector.load %arg10[%c0_79, %c0_80] : memref<8x128xf32, #tpu.memory_space<vmem>>, vector<8x128xf32>
    tpu.vector_store %arg10[%c0_79, %c0_80], %414 {strides = array<i32>} : memref<8x128xf32, #tpu.memory_space<vmem>>, vector<8x128xf32>,
    return
  }
}

</mosaic_0001>

<llo_original>
// kernel: tpu_custom_call.1
$region0: #{tpu_custom_call.1}
  #allocation0 [shape = 'u32[]', space=smem, size = 0x4, offset = 0x4, fixed_abs, tag = 'smem constant byte address 0x4 - core index']
  #allocation1 [shape = 'u32[72,128]{1,0:T(1,128)}', space=vmem, size = 0x9000, scoped, tag = 'internal scratch']
  #allocation2 [shape = 'f32[64,128]{1,0:T(8,128)}', space=vmem, size = 0x8000, scoped, tag = 'scratch operand']
  %s0 = inlined_call_operand.vmem [shape: bf16[64,16], index: 0, kind: input, shape index: {}]
  %s1 = inlined_call_operand.vmem [shape: s32[8,1], index: 1, kind: input, shape index: {}]
  %s2 = inlined_call_operand.vmem [shape: bf16[16,128], index: 2, kind: input, shape index: {}]
  %s3 = inlined_call_operand.vmem [shape: bf16[32,128], index: 3, kind: input, shape index: {}]
  %s4 = inlined_call_operand.vmem [shape: f32[1,128], index: 4, kind: input, shape index: {}]
  %s5 = inlined_call_operand.vmem [shape: bf16[32,128], index: 5, kind: input, shape index: {}]
  %s6 = inlined_call_operand.hbm [shape: bf16[32,128], index: 6, kind: input, shape index: {}]
  %s7 = inlined_call_operand.vmem [shape: f32[1,128], index: 7, kind: input, shape index: {}]
  %s8 = inlined_call_operand.hbm [shape: bf16[32,128], index: 8, kind: input, shape index: {}]
  %s9 = inlined_call_operand.vmem [shape: f32[1,128], index: 9, kind: input, shape index: {}]
  %s10 = inlined_call_operand.hbm [shape: f32[8,128], index: 10, kind: output, shape index: {}]
  %s11 = sld [smem:[#allocation0]]
  $region58: #{tpu_custom_call.1} parent=0
    _
  %s13 = ssub.s32 1, %s11
  %s14 = scalar_select 0, %s13, %s11
  $region1: #{tpu_custom_call.1} parent=0
    #allocation3 [shape = 'u8[8192]{0}', space=vmem, size = 0x2000, scoped, tag = 'input window, operand 6, single buffered']
    #allocation4 [shape = 's32[1]{0}', space=sflag, size = 0x4, scoped, tag = 'scoped memory for tpu_custom_call.1']
    #allocation5 [shape = 's32[1]{0}', space=sflag, size = 0x4, scoped, tag = 'scoped memory for tpu_custom_call.1']
    #allocation6 [shape = 'u8[8192]{0}', space=vmem, size = 0x2000, scoped, tag = 'input window, operand 8, single buffered']
    #allocation7 [shape = 's32[1]{0}', space=sflag, size = 0x4, scoped, tag = 'scoped memory for tpu_custom_call.1']
    #allocation8 [shape = 'u8[4096]{0}', space=vmem, size = 0x1000, scoped, tag = 'output window, operand 0, single buffered']
    %15 = vsyncpa [#allocation4], 0
    %16 = vsyncpa [#allocation7], 0
    %17 = vsyncpa [#allocation5], 0
    // Predicated region
    $region2: #{tpu_custom_call.1} parent=1 // pred_check
      _
    $region3: #{tpu_custom_call.1} parent=1 // pred_check_branch
      %19 = sbr.rel (0) target = $region5
    $region4: #{tpu_custom_call.1} parent=1 // pred_region
      _
    $region5: #{tpu_custom_call.1} parent=1 // pred_fallthru
      _
    // Predicated region
    $region6: #{tpu_custom_call.1} parent=1 // pred_check
      _
    $region7: #{tpu_custom_call.1} parent=1 // pred_check_branch
      %21 = sbr.rel (0) target = $region9
    $region8: #{tpu_custom_call.1} parent=1 // pred_region
      _
    $region9: #{tpu_custom_call.1} parent=1 // pred_fallthru
      _
    // Predicated region
    $region10: #{tpu_custom_call.1} parent=1 // pred_check
      _
    $region11: #{tpu_custom_call.1} parent=1 // pred_check_branch
      %23 = sbr.rel (0) target = $region13
    $region12: #{tpu_custom_call.1} parent=1 // pred_region
      _
    $region13: #{tpu_custom_call.1} parent=1 // pred_fallthru
      _
    // Predicated region
    $region14: #{tpu_custom_call.1} parent=1 // pred_check
      _
    $region15: #{tpu_custom_call.1} parent=1 // pred_check_branch
      %25 = sbr.rel (0) target = $region17
    $region16: #{tpu_custom_call.1} parent=1 // pred_region
      _
    $region17: #{tpu_custom_call.1} parent=1 // pred_fallthru
      _
    // Predicated region
    $region18: #{tpu_custom_call.1} parent=1 // pred_check
      _
    $region19: #{tpu_custom_call.1} parent=1 // pred_check_branch
      %27 = sbr.rel (0) target = $region21
    $region20: #{tpu_custom_call.1} parent=1 // pred_region
      _
    $region21: #{tpu_custom_call.1} parent=1 // pred_fallthru
      _
    // Predicated region
    $region22: #{tpu_custom_call.1} parent=1 // pred_check
      _
    $region23: #{tpu_custom_call.1} parent=1 // pred_check_branch
      %29 = sbr.rel (0) target = $region25
    $region24: #{tpu_custom_call.1} parent=1 // pred_region
      _
    $region25: #{tpu_custom_call.1} parent=1 // pred_fallthru
      _
    // Predicated region
    $region26: #{tpu_custom_call.1} parent=1 // pred_check
      _
    $region27: #{tpu_custom_call.1} parent=1 // pred_check_branch
      %31 = sbr.rel (0) target = $region29
    $region28: #{tpu_custom_call.1} parent=1 // pred_region
      %33 = vsyncadd [#allocation4], 0
      %s34 = sshll.u32 %s6, 4
      %s35 = int_to_ptr.hbm [resolvable:$true] %s34
      %s36 = sshll.u32 [#allocation3], 4
      %s37 = int_to_ptr.vmem [resolvable:$true] %s36
      %42 = dma.hbm_to_vmem [thread:$0]  %s35, 256, %s37, [#allocation4], 64, 64, 4
    $region29: #{tpu_custom_call.1} parent=1 // pred_fallthru
      _
    // Predicated region
    $region30: #{tpu_custom_call.1} parent=1 // pred_check
      _
    $region31: #{tpu_custom_call.1} parent=1 // pred_check_branch
      %44 = sbr.rel (0) target = $region33
    $region32: #{tpu_custom_call.1} parent=1 // pred_region
      _
    $region33: #{tpu_custom_call.1} parent=1 // pred_fallthru
      _
    // Predicated region
    $region34: #{tpu_custom_call.1} parent=1 // pred_check
      _
    $region35: #{tpu_custom_call.1} parent=1 // pred_check_branch
      %46 = sbr.rel (0) target = $region37
    $region36: #{tpu_custom_call.1} parent=1 // pred_region
      %48 = vsyncadd [#allocation7], 0
      %s49 = sshll.u32 %s8, 4
      %s50 = int_to_ptr.hbm [resolvable:$true] %s49
      %s51 = sshll.u32 [#allocation6], 4
      %s52 = int_to_ptr.vmem [resolvable:$true] %s51
      %57 = dma.hbm_to_vmem [thread:$0]  %s50, 256, %s52, [#allocation7], 64, 64, 4
    $region37: #{tpu_custom_call.1} parent=1 // pred_fallthru
      _
    // Predicated region
    $region38: #{tpu_custom_call.1} parent=1 // pred_check
      _
    $region39: #{tpu_custom_call.1} parent=1 // pred_check_branch
      %59 = sbr.rel (0) target = $region41
    $region40: #{tpu_custom_call.1} parent=1 // pred_region
      _
    $region41: #{tpu_custom_call.1} parent=1 // pred_fallthru
      _
    // Predicated region
    $region42: #{tpu_custom_call.1} parent=1 // pred_check
      _
    $region43: #{tpu_custom_call.1} parent=1 // pred_check_branch
      %61 = sbr.rel (0) target = $region45
    $region44: #{tpu_custom_call.1} parent=1 // pred_region
      %63 = dma.done [#allocation4], 256
    $region45: #{tpu_custom_call.1} parent=1 // pred_fallthru
      _
    // Predicated region
    $region46: #{tpu_custom_call.1} parent=1 // pred_check
      _
    $region47: #{tpu_custom_call.1} parent=1 // pred_check_branch
      %65 = sbr.rel (0) target = $region49
    $region48: #{tpu_custom_call.1} parent=1 // pred_region
      %67 = dma.done [#allocation7], 256
    $region49: #{tpu_custom_call.1} parent=1 // pred_fallthru
      _
    %v69 = vld [vmem:[%s0] sm:$0xf]
    %v70 = vld [vmem:[%s0 + $0x4] sm:$0xf]
    %v71 = vld [vmem:[%s0 + $0x8] sm:$0xf]
    %v72 = vld [vmem:[%s0 + $0xc] sm:$0xf]
    %v73 = vld [vmem:[%s0 + $0x10] sm:$0xf]
    %v74 = vld [vmem:[%s0 + $0x14] sm:$0xf]
    %v75 = vld [vmem:[%s0 + $0x18] sm:$0xf]
    %v76 = vld [vmem:[%s0 + $0x1c] sm:$0xf]
    %v77 = vld [vmem:[%s2] sm:$0xf]
    %v78 = vld [vmem:[%s2 + $0x4] sm:$0xf]
    %v79 = vld [vmem:[%s4] sm:$0x1]
    %v81 = vperm.slane %v79, 0
    %v91 = vunpack.c.l.b16 %v69
    %v92 = vunpack.c.l.b16 %v70
    %v93 = vunpack.c.l.b16 %v71
    %v94 = vunpack.c.l.b16 %v72
    %v95 = vunpack.c.l.b16 %v73
    %v96 = vunpack.c.l.b16 %v74
    %v97 = vunpack.c.l.b16 %v75
    %v98 = vunpack.c.l.b16 %v76
    %v99 = vpack.c.b16 %v92, %v91
    %v100 = vpack.c.b16 %v94, %v93
    %v101 = vpack.c.b16 %v96, %v95
    %v102 = vpack.c.b16 %v98, %v97
    %v105 = vunpack.c.l.b16 %v77
    %v106 = vunpack.c.l.b16 %v78
    %v107 = vpack.c.b16 %v106, %v105
    %vm109 = vcmask 130048
    %v111 = vsel %vm109, %v99, 0
    %v114 = vsel %vm109, %v100, 0
    %v117 = vsel %vm109, %v101, 0
    %v120 = vsel %vm109, %v102, 0
    %122 = vmatpush.bf16.msra.mxu0 0
    %123 = vmatpush.bf16.msra.mxu0 0
    %124 = vmatpush.bf16.msra.mxu0 0
    %125 = vmatpush.bf16.msra.mxu0 0
    %126 = vmatpush.bf16.msra.mxu0 0
    %127 = vmatpush.bf16.msra.mxu0 0
    %128 = vmatpush.bf16.msra.mxu0 0
    %129 = vmatpush.bf16.msra.mxu0 %v107
    %130 = vmatmul.bf16.gmra.mxu0 %v111
    %v131 = vpop.f32.mrf.mxu0
    %v132 = vadd.f32 %v81, %v131
    %v133 = vpop.f32.mrf.mxu0
    %v134 = vadd.f32 %v81, %v133
    %135 = vmatmul.bf16.gmra.mxu0 %v114
    %v136 = vpop.f32.mrf.mxu0
    %v137 = vadd.f32 %v81, %v136
    %v138 = vpop.f32.mrf.mxu0
    %v139 = vadd.f32 %v81, %v138
    %140 = vmatmul.bf16.gmra.mxu0 %v117
    %v141 = vpop.f32.mrf.mxu0
    %v142 = vadd.f32 %v81, %v141
    %v143 = vpop.f32.mrf.mxu0
    %v144 = vadd.f32 %v81, %v143
    %145 = vmatmul.bf16.gmra.mxu0 %v120
    %v146 = vpop.f32.mrf.mxu0
    %v147 = vadd.f32 %v81, %v146
    %v148 = vpop.f32.mrf.mxu0
    %v149 = vadd.f32 %v81, %v148
    %150 = vdwg.mxu0
    %151 = vst [vmem:[#allocation2] sm:$0xff] %v132
    %152 = vst [vmem:[#allocation2 + $0x8] sm:$0xff] %v134
    %153 = vst [vmem:[#allocation2 + $0x10] sm:$0xff] %v137
    %154 = vst [vmem:[#allocation2 + $0x18] sm:$0xff] %v139
    %155 = vst [vmem:[#allocation2 + $0x20] sm:$0xff] %v142
    %156 = vst [vmem:[#allocation2 + $0x28] sm:$0xff] %v144
    %157 = vst [vmem:[#allocation2 + $0x30] sm:$0xff] %v147
    %158 = vst [vmem:[#allocation2 + $0x38] sm:$0xff] %v149
    %v159 = vld [vmem:[%s3] sm:$0xf]
    %v160 = vld [vmem:[%s3 + $0x4] sm:$0xf]
    %v161 = vld [vmem:[%s3 + $0x8] sm:$0xf]
    %v162 = vld [vmem:[%s3 + $0xc] sm:$0xf]
    %v163 = vld [vmem:[%s5] sm:$0xf]
    %v164 = vld [vmem:[%s5 + $0x4] sm:$0xf]
    %v165 = vld [vmem:[%s5 + $0x8] sm:$0xf]
    %v166 = vld [vmem:[%s5 + $0xc] sm:$0xf]
    %v167 = vld [vmem:[#allocation3] sm:$0xf]
    %v168 = vld [vmem:[#allocation3 + $0x4] sm:$0xf]
    %v169 = vld [vmem:[#allocation3 + $0x8] sm:$0xf]
    %v170 = vld [vmem:[#allocation3 + $0xc] sm:$0xf]
    %v171 = vld [vmem:[%s7] sm:$0x1]
    %v173 = vperm.slane %v171, 0
    %v175 = vld [vmem:[%s1] sm:$0xff]
    %176 = vset.pattern.permute.xlu0 0
    %177 = vperm.xlu0 %176, %v175
    %v178 = vpop.permute.xlu0 %177
    %vm179 = vcmp.gt.s32.totalorder %v178, 0
    %v180 = vld [vmem:[#allocation2] sm:$0xff]
    %v185 = vunpack.c.l.b16 %v159
    %v186 = vunpack.c.l.b16 %v160
    %v187 = vunpack.c.l.b16 %v161
    %v188 = vunpack.c.l.b16 %v162
    %v189 = vpack.c.b16 %v186, %v185
    %v190 = vpack.c.b16 %v188, %v187
    %vm193 = vcmask 261120
    %v195 = vsel %vm193, 0, 0
    %197 = vmatpush.bf16.msra.mxu0 0
    %198 = vmatpush.bf16.msra.mxu0 0
    %199 = vmatpush.bf16.msra.mxu0 0
    %200 = vmatpush.bf16.msra.mxu0 0
    %201 = vmatpush.bf16.msra.mxu0 0
    %202 = vmatpush.bf16.msra.mxu0 0
    %203 = vmatpush.bf16.msra.mxu0 %v190
    %204 = vmatpush.bf16.msra.mxu0 %v189
    %205 = vmatmul.bf16.gmra.mxu0 %v195
    %v206 = vpop.f32.mrf.mxu0
    %v207 = vadd.f32 0.0, %v206
    %v208 = vpop.f32.mrf.mxu0
    %209 = vdwg.mxu0
    %v210 = vadd.f32 %v180, %v207
    %v211 = vxor.u32 %v210, 2147483648
    %v212 = vmul.f32 %v211, 1.442695
    %v213 = vpow.pop %v212
    %v214 = vadd.f32 %v213, 1.0
    %v215 = vrcp.pop %v214
    %v216 = vmul.f32 %v214, %v215
    %v217 = vsub.f32 1.0, %v216
    %v218 = vmul.f32 %v215, %v217
    %v219 = vadd.f32 %v215, %v218
    %vm220 = vweird.f32 %v214
    %vm221 = vweird.f32 %v215
    %vm222 = vmor %vm220, %vm221
    %v223 = vsel %vm222, %v215, %v219
    %v224 = vand.u32 2147483647, %v214
    %vm225 = vcmp.eq.f32.partialorder %v224, 8.507059e+37
    %v226 = vand.u32 %v214, 2147483648
    %v227 = vor.u32 1.1754944e-38, %v226
    %v228 = vsel %vm225, %v227, %v223
    %v229 = vmul.f32 1.0, %v228
    %v230 = vtanh.pop %v210
    %v231 = vmul.f32 %v229, 0.0
    %233 = vrot.lane.b32.xlu0 %v230, 64
    %v234 = vpop.permute.xlu0 %233
    %v236 = vmul.f32 %v229, %v234
    %238 = vrot.lane.b32.xlu0 %v236, 32
    %v239 = vpop.permute.xlu0 %238
    %v241 = vadd.f32 %v231, %v239
    %v242 = vtanh.pop %v241
    %244 = vrot.lane.b32.xlu0 %v242, 64
    %v245 = vpop.permute.xlu0 %244
    %v247 = vmul.f32 %v229, %v245
    %v248 = vsel %vm179, %v247, 0.0
    %v249 = vsel %vm179, %v241, 0.0
    %v250 = vpack.c.bf16 %v248, %v248
    %v255 = vunpack.c.l.b16 %v167
    %v256 = vunpack.c.l.b16 %v168
    %v257 = vunpack.c.l.b16 %v169
    %v258 = vunpack.c.l.b16 %v170
    %v259 = vpack.c.b16 %v256, %v255
    %v260 = vpack.c.b16 %v258, %v257
    %263 = vmatpush.bf16.msra.mxu0 0
    %264 = vmatpush.bf16.msra.mxu0 0
    %265 = vmatpush.bf16.msra.mxu0 0
    %266 = vmatpush.bf16.msra.mxu0 0
    %267 = vmatpush.bf16.msra.mxu0 0
    %268 = vmatpush.bf16.msra.mxu0 0
    %269 = vmatpush.bf16.msra.mxu0 %v260
    %270 = vmatpush.bf16.msra.mxu0 %v259
    %271 = vmatmul.bf16.gmra.mxu0 %v195
    %v272 = vpop.f32.mrf.mxu0
    %v273 = vadd.f32 0.0, %v272
    %v274 = vpop.f32.mrf.mxu0
    %275 = vdwg.mxu0
    %277 = vrot.lane.b32.xlu0 %v250, 32
    %v278 = vpop.permute.xlu0 %277
    %v283 = vunpack.c.l.b16 %v163
    %v284 = vunpack.c.l.b16 %v164
    %v285 = vunpack.c.l.b16 %v165
    %v286 = vunpack.c.l.b16 %v166
    %v287 = vpack.c.b16 %v284, %v283
    %v288 = vpack.c.b16 %v286, %v285
    %v292 = vsel %vm193, %v278, 0
    %294 = vmatpush.bf16.msra.mxu0 0
    %295 = vmatpush.bf16.msra.mxu0 0
    %296 = vmatpush.bf16.msra.mxu0 0
    %297 = vmatpush.bf16.msra.mxu0 0
    %298 = vmatpush.bf16.msra.mxu0 0
    %299 = vmatpush.bf16.msra.mxu0 0
    %300 = vmatpush.bf16.msra.mxu0 %v288
    %301 = vmatpush.bf16.msra.mxu0 %v287
    %302 = vmatmul.bf16.gmra.mxu0 %v292
    %v303 = vpop.f32.mrf.mxu0
    %v304 = vadd.f32 %v273, %v303
    %v305 = vpop.f32.mrf.mxu0
    %306 = vdwg.mxu0
    %v307 = vadd.f32 %v304, %v173
    %v308 = vxor.u32 %v307, 2147483648
    %v309 = vmul.f32 %v308, 1.442695
    %v310 = vpow.pop %v309
    %v311 = vadd.f32 %v310, 1.0
    %v312 = vrcp.pop %v311
    %v313 = vmul.f32 %v311, %v312
    %v314 = vsub.f32 1.0, %v313
    %v315 = vmul.f32 %v312, %v314
    %v316 = vadd.f32 %v312, %v315
    %vm317 = vweird.f32 %v311
    %vm318 = vweird.f32 %v312
    %vm319 = vmor %vm317, %vm318
    %v320 = vsel %vm319, %v312, %v316
    %v321 = vand.u32 2147483647, %v311
    %vm322 = vcmp.eq.f32.partialorder %v321, 8.507059e+37
    %v323 = vand.u32 %v311, 2147483648
    %v324 = vor.u32 1.1754944e-38, %v323
    %v325 = vsel %vm322, %v324, %v320
    %v326 = vmul.f32 1.0, %v325
    %v327 = vtanh.pop %v307
    %v328 = vmul.f32 %v326, 0.0
    %330 = vrot.lane.b32.xlu0 %v327, 64
    %v331 = vpop.permute.xlu0 %330
    %v333 = vmul.f32 %v326, %v331
    %335 = vrot.lane.b32.xlu0 %v333, 32
    %v336 = vpop.permute.xlu0 %335
    %v338 = vadd.f32 %v328, %v336
    %v339 = vtanh.pop %v338
    %341 = vrot.lane.b32.xlu0 %v339, 64
    %v342 = vpop.permute.xlu0 %341
    %v344 = vmul.f32 %v326, %v342
    %v345 = vsel %vm179, %v344, 0.0
    %v346 = vsel %vm179, %v338, 0.0
    %vm347 = vcmp.gt.s32.totalorder %v178, 1
    %s348 = scalar_lea.vmem [#allocation2], 8
    %v349 = vld [vmem:[%s348] sm:$0xff]
    %350 = vmatpush.bf16.msra.mxu0 0
    %351 = vmatpush.bf16.msra.mxu0 0
    %352 = vmatpush.bf16.msra.mxu0 0
    %353 = vmatpush.bf16.msra.mxu0 0
    %354 = vmatpush.bf16.msra.mxu0 0
    %355 = vmatpush.bf16.msra.mxu0 0
    %356 = vmatpush.bf16.msra.mxu0 %v190
    %357 = vmatpush.bf16.msra.mxu0 %v189
    %358 = vmatmul.bf16.gmra.mxu0 %v292
    %v359 = vpop.f32.mrf.mxu0
    %v360 = vadd.f32 0.0, %v359
    %v361 = vpop.f32.mrf.mxu0
    %362 = vdwg.mxu0
    %v363 = vadd.f32 %v349, %v360
    %v364 = vxor.u32 %v363, 2147483648
    %v365 = vmul.f32 %v364, 1.442695
    %v366 = vpow.pop %v365
    %v367 = vadd.f32 %v366, 1.0
    %v368 = vrcp.pop %v367
    %v369 = vmul.f32 %v367, %v368
    %v370 = vsub.f32 1.0, %v369
    %v371 = vmul.f32 %v368, %v370
    %v372 = vadd.f32 %v368, %v371
    %vm373 = vweird.f32 %v367
    %vm374 = vweird.f32 %v368
    %vm375 = vmor %vm373, %vm374
    %v376 = vsel %vm375, %v368, %v372
    %v377 = vand.u32 2147483647, %v367
    %vm378 = vcmp.eq.f32.partialorder %v377, 8.507059e+37
    %v379 = vand.u32 %v367, 2147483648
    %v380 = vor.u32 1.1754944e-38, %v379
    %v381 = vsel %vm378, %v380, %v376
    %v382 = vmul.f32 1.0, %v381
    %v383 = vtanh.pop %v363
    %v384 = vmul.f32 %v382, %v249
    %386 = vrot.lane.b32.xlu0 %v383, 64
    %v387 = vpop.permute.xlu0 %386
    %v389 = vmul.f32 %v382, %v387
    %391 = vrot.lane.b32.xlu0 %v389, 32
    %v392 = vpop.permute.xlu0 %391
    %v394 = vadd.f32 %v384, %v392
    %v395 = vtanh.pop %v394
    %397 = vrot.lane.b32.xlu0 %v395, 64
    %v398 = vpop.permute.xlu0 %397
    %v400 = vmul.f32 %v382, %v398
    %v401 = vsel %vm347, %v400, %v248
    %v402 = vsel %vm347, %v394, %v249
    %v403 = vpack.c.bf16 %v401, %v401
    %v404 = vpack.c.bf16 %v345, %v345
    %406 = vrot.lane.b32.xlu0 %v404, 32
    %v407 = vpop.permute.xlu0 %406
    %v409 = vsel %vm193, %v407, 0
    %411 = vmatpush.bf16.msra.mxu0 0
    %412 = vmatpush.bf16.msra.mxu0 0
    %413 = vmatpush.bf16.msra.mxu0 0
    %414 = vmatpush.bf16.msra.mxu0 0
    %415 = vmatpush.bf16.msra.mxu0 0
    %416 = vmatpush.bf16.msra.mxu0 0
    %417 = vmatpush.bf16.msra.mxu0 %v260
    %418 = vmatpush.bf16.msra.mxu0 %v259
    %419 = vmatmul.bf16.gmra.mxu0 %v409
    %v420 = vpop.f32.mrf.mxu0
    %v421 = vadd.f32 0.0, %v420
    %v422 = vpop.f32.mrf.mxu0
    %423 = vdwg.mxu0
    %425 = vrot.lane.b32.xlu0 %v403, 32
    %v426 = vpop.permute.xlu0 %425
    %v428 = vsel %vm193, %v426, 0
    %430 = vmatpush.bf16.msra.mxu0 0
    %431 = vmatpush.bf16.msra.mxu0 0
    %432 = vmatpush.bf16.msra.mxu0 0
    %433 = vmatpush.bf16.msra.mxu0 0
    %434 = vmatpush.bf16.msra.mxu0 0
    %435 = vmatpush.bf16.msra.mxu0 0
    %436 = vmatpush.bf16.msra.mxu0 %v288
    %437 = vmatpush.bf16.msra.mxu0 %v287
    %438 = vmatmul.bf16.gmra.mxu0 %v428
    %v439 = vpop.f32.mrf.mxu0
    %v440 = vadd.f32 %v421, %v439
    %v441 = vpop.f32.mrf.mxu0
    %442 = vdwg.mxu0
    %v443 = vadd.f32 %v440, %v173
    %v444 = vxor.u32 %v443, 2147483648
    %v445 = vmul.f32 %v444, 1.442695
    %v446 = vpow.pop %v445
    %v447 = vadd.f32 %v446, 1.0
    %v448 = vrcp.pop %v447
    %v449 = vmul.f32 %v447, %v448
    %v450 = vsub.f32 1.0, %v449
    %v451 = vmul.f32 %v448, %v450
    %v452 = vadd.f32 %v448, %v451
    %vm453 = vweird.f32 %v447
    %vm454 = vweird.f32 %v448
    %vm455 = vmor %vm453, %vm454
    %v456 = vsel %vm455, %v448, %v452
    %v457 = vand.u32 2147483647, %v447
    %vm458 = vcmp.eq.f32.partialorder %v457, 8.507059e+37
    %v459 = vand.u32 %v447, 2147483648
    %v460 = vor.u32 1.1754944e-38, %v459
    %v461 = vsel %vm458, %v460, %v456
    %v462 = vmul.f32 1.0, %v461
    %v463 = vtanh.pop %v443
    %v464 = vmul.f32 %v462, %v346
    %466 = vrot.lane.b32.xlu0 %v463, 64
    %v467 = vpop.permute.xlu0 %466
    %v469 = vmul.f32 %v462, %v467
    %471 = vrot.lane.b32.xlu0 %v469, 32
    %v472 = vpop.permute.xlu0 %471
    %v474 = vadd.f32 %v464, %v472
    %v475 = vtanh.pop %v474
    %477 = vrot.lane.b32.xlu0 %v475, 64
    %v478 = vpop.permute.xlu0 %477
    %v480 = vmul.f32 %v462, %v478
    %v481 = vsel %vm347, %v480, %v345
    %v482 = vsel %vm347, %v474, %v346
    %vm483 = vcmp.gt.s32.totalorder %v178, 2
    %s484 = scalar_lea.vmem [#allocation2], 16
    %v485 = vld [vmem:[%s484] sm:$0xff]
    %486 = vmatpush.bf16.msra.mxu0 0
    %487 = vmatpush.bf16.msra.mxu0 0
    %488 = vmatpush.bf16.msra.mxu0 0
    %489 = vmatpush.bf16.msra.mxu0 0
    %490 = vmatpush.bf16.msra.mxu0 0
    %491 = vmatpush.bf16.msra.mxu0 0
    %492 = vmatpush.bf16.msra.mxu0 %v190
    %493 = vmatpush.bf16.msra.mxu0 %v189
    %494 = vmatmul.bf16.gmra.mxu0 %v428
    %v495 = vpop.f32.mrf.mxu0
    %v496 = vadd.f32 0.0, %v495
    %v497 = vpop.f32.mrf.mxu0
    %498 = vdwg.mxu0
    %v499 = vadd.f32 %v485, %v496
    %v500 = vxor.u32 %v499, 2147483648
    %v501 = vmul.f32 %v500, 1.442695
    %v502 = vpow.pop %v501
    %v503 = vadd.f32 %v502, 1.0
    %v504 = vrcp.pop %v503
    %v505 = vmul.f32 %v503, %v504
    %v506 = vsub.f32 1.0, %v505
    %v507 = vmul.f32 %v504, %v506
    %v508 = vadd.f32 %v504, %v507
    %vm509 = vweird.f32 %v503
    %vm510 = vweird.f32 %v504
    %vm511 = vmor %vm509, %vm510
    %v512 = vsel %vm511, %v504, %v508
    %v513 = vand.u32 2147483647, %v503
    %vm514 = vcmp.eq.f32.partialorder %v513, 8.507059e+37
    %v515 = vand.u32 %v503, 2147483648
    %v516 = vor.u32 1.1754944e-38, %v515
    %v517 = vsel %vm514, %v516, %v512
    %v518 = vmul.f32 1.0, %v517
    %v519 = vtanh.pop %v499
    %v520 = vmul.f32 %v518, %v402
    %522 = vrot.lane.b32.xlu0 %v519, 64
    %v523 = vpop.permute.xlu0 %522
    %v525 = vmul.f32 %v518, %v523
    %527 = vrot.lane.b32.xlu0 %v525, 32
    %v528 = vpop.permute.xlu0 %527
    %v530 = vadd.f32 %v520, %v528
    %v531 = vtanh.pop %v530
    %533 = vrot.lane.b32.xlu0 %v531, 64
    %v534 = vpop.permute.xlu0 %533
    %v536 = vmul.f32 %v518, %v534
    %v537 = vsel %vm483, %v536, %v401
    %v538 = vsel %vm483, %v530, %v402
    %v539 = vpack.c.bf16 %v537, %v537
    %v540 = vpack.c.bf16 %v481, %v481
    %542 = vrot.lane.b32.xlu0 %v540, 32
    %v543 = vpop.permute.xlu0 %542
    %v545 = vsel %vm193, %v543, 0
    %547 = vmatpush.bf16.msra.mxu0 0
    %548 = vmatpush.bf16.msra.mxu0 0
    %549 = vmatpush.bf16.msra.mxu0 0
    %550 = vmatpush.bf16.msra.mxu0 0
    %551 = vmatpush.bf16.msra.mxu0 0
    %552 = vmatpush.bf16.msra.mxu0 0
    %553 = vmatpush.bf16.msra.mxu0 %v260
    %554 = vmatpush.bf16.msra.mxu0 %v259
    %555 = vmatmul.bf16.gmra.mxu0 %v545
    %v556 = vpop.f32.mrf.mxu0
    %v557 = vadd.f32 0.0, %v556
    %v558 = vpop.f32.mrf.mxu0
    %559 = vdwg.mxu0
    %561 = vrot.lane.b32.xlu0 %v539, 32
    %v562 = vpop.permute.xlu0 %561
    %v564 = vsel %vm193, %v562, 0
    %566 = vmatpush.bf16.msra.mxu0 0
    %567 = vmatpush.bf16.msra.mxu0 0
    %568 = vmatpush.bf16.msra.mxu0 0
    %569 = vmatpush.bf16.msra.mxu0 0
    %570 = vmatpush.bf16.msra.mxu0 0
    %571 = vmatpush.bf16.msra.mxu0 0
    %572 = vmatpush.bf16.msra.mxu0 %v288
    %573 = vmatpush.bf16.msra.mxu0 %v287
    %574 = vmatmul.bf16.gmra.mxu0 %v564
    %v575 = vpop.f32.mrf.mxu0
    %v576 = vadd.f32 %v557, %v575
    %v577 = vpop.f32.mrf.mxu0
    %578 = vdwg.mxu0
    %v579 = vadd.f32 %v576, %v173
    %v580 = vxor.u32 %v579, 2147483648
    %v581 = vmul.f32 %v580, 1.442695
    %v582 = vpow.pop %v581
    %v583 = vadd.f32 %v582, 1.0
    %v584 = vrcp.pop %v583
    %v585 = vmul.f32 %v583, %v584
    %v586 = vsub.f32 1.0, %v585
    %v587 = vmul.f32 %v584, %v586
    %v588 = vadd.f32 %v584, %v587
    %vm589 = vweird.f32 %v583
    %vm590 = vweird.f32 %v584
    %vm591 = vmor %vm589, %vm590
    %v592 = vsel %vm591, %v584, %v588
    %v593 = vand.u32 2147483647, %v583
    %vm594 = vcmp.eq.f32.partialorder %v593, 8.507059e+37
    %v595 = vand.u32 %v583, 2147483648
    %v596 = vor.u32 1.1754944e-38, %v595
    %v597 = vsel %vm594, %v596, %v592
    %v598 = vmul.f32 1.0, %v597
    %v599 = vtanh.pop %v579
    %v600 = vmul.f32 %v598, %v482
    %602 = vrot.lane.b32.xlu0 %v599, 64
    %v603 = vpop.permute.xlu0 %602
    %v605 = vmul.f32 %v598, %v603
    %607 = vrot.lane.b32.xlu0 %v605, 32
    %v608 = vpop.permute.xlu0 %607
    %v610 = vadd.f32 %v600, %v608
    %v611 = vtanh.pop %v610
    %613 = vrot.lane.b32.xlu0 %v611, 64
    %v614 = vpop.permute.xlu0 %613
    %v616 = vmul.f32 %v598, %v614
    %v617 = vsel %vm483, %v616, %v481
    %v618 = vsel %vm483, %v610, %v482
    %vm619 = vcmp.gt.s32.totalorder %v178, 3
    %s620 = scalar_lea.vmem [#allocation2], 24
    %v621 = vld [vmem:[%s620] sm:$0xff]
    %622 = vmatpush.bf16.msra.mxu0 0
    %623 = vmatpush.bf16.msra.mxu0 0
    %624 = vmatpush.bf16.msra.mxu0 0
    %625 = vmatpush.bf16.msra.mxu0 0
    %626 = vmatpush.bf16.msra.mxu0 0
    %627 = vmatpush.bf16.msra.mxu0 0
    %628 = vmatpush.bf16.msra.mxu0 %v190
    %629 = vmatpush.bf16.msra.mxu0 %v189
    %630 = vmatmul.bf16.gmra.mxu0 %v564
    %v631 = vpop.f32.mrf.mxu0
    %v632 = vadd.f32 0.0, %v631
    %v633 = vpop.f32.mrf.mxu0
    %634 = vdwg.mxu0
    %v635 = vadd.f32 %v621, %v632
    %v636 = vxor.u32 %v635, 2147483648
    %v637 = vmul.f32 %v636, 1.442695
    %v638 = vpow.pop %v637
    %v639 = vadd.f32 %v638, 1.0
    %v640 = vrcp.pop %v639
    %v641 = vmul.f32 %v639, %v640
    %v642 = vsub.f32 1.0, %v641
    %v643 = vmul.f32 %v640, %v642
    %v644 = vadd.f32 %v640, %v643
    %vm645 = vweird.f32 %v639
    %vm646 = vweird.f32 %v640
    %vm647 = vmor %vm645, %vm646
    %v648 = vsel %vm647, %v640, %v644
    %v649 = vand.u32 2147483647, %v639
    %vm650 = vcmp.eq.f32.partialorder %v649, 8.507059e+37
    %v651 = vand.u32 %v639, 2147483648
    %v652 = vor.u32 1.1754944e-38, %v651
    %v653 = vsel %vm650, %v652, %v648
    %v654 = vmul.f32 1.0, %v653
    %v655 = vtanh.pop %v635
    %v656 = vmul.f32 %v654, %v538
    %658 = vrot.lane.b32.xlu0 %v655, 64
    %v659 = vpop.permute.xlu0 %658
    %v661 = vmul.f32 %v654, %v659
    %663 = vrot.lane.b32.xlu0 %v661, 32
    %v664 = vpop.permute.xlu0 %663
    %v666 = vadd.f32 %v656, %v664
    %v667 = vtanh.pop %v666
    %669 = vrot.lane.b32.xlu0 %v667, 64
    %v670 = vpop.permute.xlu0 %669
    %v672 = vmul.f32 %v654, %v670
    %v673 = vsel %vm619, %v672, %v537
    %v674 = vsel %vm619, %v666, %v538
    %v675 = vpack.c.bf16 %v673, %v673
    %v676 = vpack.c.bf16 %v617, %v617
    %678 = vrot.lane.b32.xlu0 %v676, 32
    %v679 = vpop.permute.xlu0 %678
    %v681 = vsel %vm193, %v679, 0
    %683 = vmatpush.bf16.msra.mxu0 0
    %684 = vmatpush.bf16.msra.mxu0 0
    %685 = vmatpush.bf16.msra.mxu0 0
    %686 = vmatpush.bf16.msra.mxu0 0
    %687 = vmatpush.bf16.msra.mxu0 0
    %688 = vmatpush.bf16.msra.mxu0 0
    %689 = vmatpush.bf16.msra.mxu0 %v260
    %690 = vmatpush.bf16.msra.mxu0 %v259
    %691 = vmatmul.bf16.gmra.mxu0 %v681
    %v692 = vpop.f32.mrf.mxu0
    %v693 = vadd.f32 0.0, %v692
    %v694 = vpop.f32.mrf.mxu0
    %695 = vdwg.mxu0
    %697 = vrot.lane.b32.xlu0 %v675, 32
    %v698 = vpop.permute.xlu0 %697
    %v700 = vsel %vm193, %v698, 0
    %702 = vmatpush.bf16.msra.mxu0 0
    %703 = vmatpush.bf16.msra.mxu0 0
    %704 = vmatpush.bf16.msra.mxu0 0
    %705 = vmatpush.bf16.msra.mxu0 0
    %706 = vmatpush.bf16.msra.mxu0 0
    %707 = vmatpush.bf16.msra.mxu0 0
    %708 = vmatpush.bf16.msra.mxu0 %v288
    %709 = vmatpush.bf16.msra.mxu0 %v287
    %710 = vmatmul.bf16.gmra.mxu0 %v700
    %v711 = vpop.f32.mrf.mxu0
    %v712 = vadd.f32 %v693, %v711
    %v713 = vpop.f32.mrf.mxu0
    %714 = vdwg.mxu0
    %v715 = vadd.f32 %v712, %v173
    %v716 = vxor.u32 %v715, 2147483648
    %v717 = vmul.f32 %v716, 1.442695
    %v718 = vpow.pop %v717
    %v719 = vadd.f32 %v718, 1.0
    %v720 = vrcp.pop %v719
    %v721 = vmul.f32 %v719, %v720
    %v722 = vsub.f32 1.0, %v721
    %v723 = vmul.f32 %v720, %v722
    %v724 = vadd.f32 %v720, %v723
    %vm725 = vweird.f32 %v719
    %vm726 = vweird.f32 %v720
    %vm727 = vmor %vm725, %vm726
    %v728 = vsel %vm727, %v720, %v724
    %v729 = vand.u32 2147483647, %v719
    %vm730 = vcmp.eq.f32.partialorder %v729, 8.507059e+37
    %v731 = vand.u32 %v719, 2147483648
    %v732 = vor.u32 1.1754944e-38, %v731
    %v733 = vsel %vm730, %v732, %v728
    %v734 = vmul.f32 1.0, %v733
    %v735 = vtanh.pop %v715
    %v736 = vmul.f32 %v734, %v618
    %738 = vrot.lane.b32.xlu0 %v735, 64
    %v739 = vpop.permute.xlu0 %738
    %v741 = vmul.f32 %v734, %v739
    %743 = vrot.lane.b32.xlu0 %v741, 32
    %v744 = vpop.permute.xlu0 %743
    %v746 = vadd.f32 %v736, %v744
    %v747 = vtanh.pop %v746
    %749 = vrot.lane.b32.xlu0 %v747, 64
    %v750 = vpop.permute.xlu0 %749
    %v752 = vmul.f32 %v734, %v750
    %v753 = vsel %vm619, %v752, %v617
    %v754 = vsel %vm619, %v746, %v618
    %vm755 = vcmp.gt.s32.totalorder %v178, 4
    %s756 = scalar_lea.vmem [#allocation2], 32
    %v757 = vld [vmem:[%s756] sm:$0xff]
    %758 = vmatpush.bf16.msra.mxu0 0
    %759 = vmatpush.bf16.msra.mxu0 0
    %760 = vmatpush.bf16.msra.mxu0 0
    %761 = vmatpush.bf16.msra.mxu0 0
    %762 = vmatpush.bf16.msra.mxu0 0
    %763 = vmatpush.bf16.msra.mxu0 0
    %764 = vmatpush.bf16.msra.mxu0 %v190
    %765 = vmatpush.bf16.msra.mxu0 %v189
    %766 = vmatmul.bf16.gmra.mxu0 %v700
    %v767 = vpop.f32.mrf.mxu0
    %v768 = vadd.f32 0.0, %v767
    %v769 = vpop.f32.mrf.mxu0
    %770 = vdwg.mxu0
    %v771 = vadd.f32 %v757, %v768
    %v772 = vxor.u32 %v771, 2147483648
    %v773 = vmul.f32 %v772, 1.442695
    %v774 = vpow.pop %v773
    %v775 = vadd.f32 %v774, 1.0
    %v776 = vrcp.pop %v775
    %v777 = vmul.f32 %v775, %v776
    %v778 = vsub.f32 1.0, %v777
    %v779 = vmul.f32 %v776, %v778
    %v780 = vadd.f32 %v776, %v779
    %vm781 = vweird.f32 %v775
    %vm782 = vweird.f32 %v776
    %vm783 = vmor %vm781, %vm782
    %v784 = vsel %vm783, %v776, %v780
    %v785 = vand.u32 2147483647, %v775
    %vm786 = vcmp.eq.f32.partialorder %v785, 8.507059e+37
    %v787 = vand.u32 %v775, 2147483648
    %v788 = vor.u32 1.1754944e-38, %v787
    %v789 = vsel %vm786, %v788, %v784
    %v790 = vmul.f32 1.0, %v789
    %v791 = vtanh.pop %v771
    %v792 = vmul.f32 %v790, %v674
    %794 = vrot.lane.b32.xlu0 %v791, 64
    %v795 = vpop.permute.xlu0 %794
    %v797 = vmul.f32 %v790, %v795
    %799 = vrot.lane.b32.xlu0 %v797, 32
    %v800 = vpop.permute.xlu0 %799
    %v802 = vadd.f32 %v792, %v800
    %v803 = vtanh.pop %v802
    %805 = vrot.lane.b32.xlu0 %v803, 64
    %v806 = vpop.permute.xlu0 %805
    %v808 = vmul.f32 %v790, %v806
    %v809 = vsel %vm755, %v808, %v673
    %v810 = vsel %vm755, %v802, %v674
    %v811 = vpack.c.bf16 %v809, %v809
    %v812 = vpack.c.bf16 %v753, %v753
    %814 = vrot.lane.b32.xlu0 %v812, 32
    %v815 = vpop.permute.xlu0 %814
    %v817 = vsel %vm193, %v815, 0
    %819 = vmatpush.bf16.msra.mxu0 0
    %820 = vmatpush.bf16.msra.mxu0 0
    %821 = vmatpush.bf16.msra.mxu0 0
    %822 = vmatpush.bf16.msra.mxu0 0
    %823 = vmatpush.bf16.msra.mxu0 0
    %824 = vmatpush.bf16.msra.mxu0 0
    %825 = vmatpush.bf16.msra.mxu0 %v260
    %826 = vmatpush.bf16.msra.mxu0 %v259
    %827 = vmatmul.bf16.gmra.mxu0 %v817
    %v828 = vpop.f32.mrf.mxu0
    %v829 = vadd.f32 0.0, %v828
    %v830 = vpop.f32.mrf.mxu0
    %831 = vdwg.mxu0
    %833 = vrot.lane.b32.xlu0 %v811, 32
    %v834 = vpop.permute.xlu0 %833
    %v836 = vsel %vm193, %v834, 0
    %838 = vmatpush.bf16.msra.mxu0 0
    %839 = vmatpush.bf16.msra.mxu0 0
    %840 = vmatpush.bf16.msra.mxu0 0
    %841 = vmatpush.bf16.msra.mxu0 0
    %842 = vmatpush.bf16.msra.mxu0 0
    %843 = vmatpush.bf16.msra.mxu0 0
    %844 = vmatpush.bf16.msra.mxu0 %v288
    %845 = vmatpush.bf16.msra.mxu0 %v287
    %846 = vmatmul.bf16.gmra.mxu0 %v836
    %v847 = vpop.f32.mrf.mxu0
    %v848 = vadd.f32 %v829, %v847
    %v849 = vpop.f32.mrf.mxu0
    %850 = vdwg.mxu0
    %v851 = vadd.f32 %v848, %v173
    %v852 = vxor.u32 %v851, 2147483648
    %v853 = vmul.f32 %v852, 1.442695
    %v854 = vpow.pop %v853
    %v855 = vadd.f32 %v854, 1.0
    %v856 = vrcp.pop %v855
    %v857 = vmul.f32 %v855, %v856
    %v858 = vsub.f32 1.0, %v857
    %v859 = vmul.f32 %v856, %v858
    %v860 = vadd.f32 %v856, %v859
    %vm861 = vweird.f32 %v855
    %vm862 = vweird.f32 %v856
    %vm863 = vmor %vm861, %vm862
    %v864 = vsel %vm863, %v856, %v860
    %v865 = vand.u32 2147483647, %v855
    %vm866 = vcmp.eq.f32.partialorder %v865, 8.507059e+37
    %v867 = vand.u32 %v855, 2147483648
    %v868 = vor.u32 1.1754944e-38, %v867
    %v869 = vsel %vm866, %v868, %v864
    %v870 = vmul.f32 1.0, %v869
    %v871 = vtanh.pop %v851
    %v872 = vmul.f32 %v870, %v754
    %874 = vrot.lane.b32.xlu0 %v871, 64
    %v875 = vpop.permute.xlu0 %874
    %v877 = vmul.f32 %v870, %v875
    %879 = vrot.lane.b32.xlu0 %v877, 32
    %v880 = vpop.permute.xlu0 %879
    %v882 = vadd.f32 %v872, %v880
    %v883 = vtanh.pop %v882
    %885 = vrot.lane.b32.xlu0 %v883, 64
    %v886 = vpop.permute.xlu0 %885
    %v888 = vmul.f32 %v870, %v886
    %v889 = vsel %vm755, %v888, %v753
    %v890 = vsel %vm755, %v882, %v754
    %vm891 = vcmp.gt.s32.totalorder %v178, 5
    %s892 = scalar_lea.vmem [#allocation2], 40
    %v893 = vld [vmem:[%s892] sm:$0xff]
    %894 = vmatpush.bf16.msra.mxu0 0
    %895 = vmatpush.bf16.msra.mxu0 0
    %896 = vmatpush.bf16.msra.mxu0 0
    %897 = vmatpush.bf16.msra.mxu0 0
    %898 = vmatpush.bf16.msra.mxu0 0
    %899 = vmatpush.bf16.msra.mxu0 0
    %900 = vmatpush.bf16.msra.mxu0 %v190
    %901 = vmatpush.bf16.msra.mxu0 %v189
    %902 = vmatmul.bf16.gmra.mxu0 %v836
    %v903 = vpop.f32.mrf.mxu0
    %v904 = vadd.f32 0.0, %v903
    %v905 = vpop.f32.mrf.mxu0
    %906 = vdwg.mxu0
    %v907 = vadd.f32 %v893, %v904
    %v908 = vxor.u32 %v907, 2147483648
    %v909 = vmul.f32 %v908, 1.442695
    %v910 = vpow.pop %v909
    %v911 = vadd.f32 %v910, 1.0
    %v912 = vrcp.pop %v911
    %v913 = vmul.f32 %v911, %v912
    %v914 = vsub.f32 1.0, %v913
    %v915 = vmul.f32 %v912, %v914
    %v916 = vadd.f32 %v912, %v915
    %vm917 = vweird.f32 %v911
    %vm918 = vweird.f32 %v912
    %vm919 = vmor %vm917, %vm918
    %v920 = vsel %vm919, %v912, %v916
    %v921 = vand.u32 2147483647, %v911
    %vm922 = vcmp.eq.f32.partialorder %v921, 8.507059e+37
    %v923 = vand.u32 %v911, 2147483648
    %v924 = vor.u32 1.1754944e-38, %v923
    %v925 = vsel %vm922, %v924, %v920
    %v926 = vmul.f32 1.0, %v925
    %v927 = vtanh.pop %v907
    %v928 = vmul.f32 %v926, %v810
    %930 = vrot.lane.b32.xlu0 %v927, 64
    %v931 = vpop.permute.xlu0 %930
    %v933 = vmul.f32 %v926, %v931
    %935 = vrot.lane.b32.xlu0 %v933, 32
    %v936 = vpop.permute.xlu0 %935
    %v938 = vadd.f32 %v928, %v936
    %v939 = vtanh.pop %v938
    %941 = vrot.lane.b32.xlu0 %v939, 64
    %v942 = vpop.permute.xlu0 %941
    %v944 = vmul.f32 %v926, %v942
    %v945 = vsel %vm891, %v944, %v809
    %v946 = vsel %vm891, %v938, %v810
    %v947 = vpack.c.bf16 %v945, %v945
    %v948 = vpack.c.bf16 %v889, %v889
    %950 = vrot.lane.b32.xlu0 %v948, 32
    %v951 = vpop.permute.xlu0 %950
    %v953 = vsel %vm193, %v951, 0
    %955 = vmatpush.bf16.msra.mxu0 0
    %956 = vmatpush.bf16.msra.mxu0 0
    %957 = vmatpush.bf16.msra.mxu0 0
    %958 = vmatpush.bf16.msra.mxu0 0
    %959 = vmatpush.bf16.msra.mxu0 0
    %960 = vmatpush.bf16.msra.mxu0 0
    %961 = vmatpush.bf16.msra.mxu0 %v260
    %962 = vmatpush.bf16.msra.mxu0 %v259
    %963 = vmatmul.bf16.gmra.mxu0 %v953
    %v964 = vpop.f32.mrf.mxu0
    %v965 = vadd.f32 0.0, %v964
    %v966 = vpop.f32.mrf.mxu0
    %967 = vdwg.mxu0
    %969 = vrot.lane.b32.xlu0 %v947, 32
    %v970 = vpop.permute.xlu0 %969
    %v972 = vsel %vm193, %v970, 0
    %974 = vmatpush.bf16.msra.mxu0 0
    %975 = vmatpush.bf16.msra.mxu0 0
    %976 = vmatpush.bf16.msra.mxu0 0
    %977 = vmatpush.bf16.msra.mxu0 0
    %978 = vmatpush.bf16.msra.mxu0 0
    %979 = vmatpush.bf16.msra.mxu0 0
    %980 = vmatpush.bf16.msra.mxu0 %v288
    %981 = vmatpush.bf16.msra.mxu0 %v287
    %982 = vmatmul.bf16.gmra.mxu0 %v972
    %v983 = vpop.f32.mrf.mxu0
    %v984 = vadd.f32 %v965, %v983
    %v985 = vpop.f32.mrf.mxu0
    %986 = vdwg.mxu0
    %v987 = vadd.f32 %v984, %v173
    %v988 = vxor.u32 %v987, 2147483648
    %v989 = vmul.f32 %v988, 1.442695
    %v990 = vpow.pop %v989
    %v991 = vadd.f32 %v990, 1.0
    %v992 = vrcp.pop %v991
    %v993 = vmul.f32 %v991, %v992
    %v994 = vsub.f32 1.0, %v993
    %v995 = vmul.f32 %v992, %v994
    %v996 = vadd.f32 %v992, %v995
    %vm997 = vweird.f32 %v991
    %vm998 = vweird.f32 %v992
    %vm999 = vmor %vm997, %vm998
    %v1000 = vsel %vm999, %v992, %v996
    %v1001 = vand.u32 2147483647, %v991
    %vm1002 = vcmp.eq.f32.partialorder %v1001, 8.507059e+37
    %v1003 = vand.u32 %v991, 2147483648
    %v1004 = vor.u32 1.1754944e-38, %v1003
    %v1005 = vsel %vm1002, %v1004, %v1000
    %v1006 = vmul.f32 1.0, %v1005
    %v1007 = vtanh.pop %v987
    %v1008 = vmul.f32 %v1006, %v890
    %1010 = vrot.lane.b32.xlu0 %v1007, 64
    %v1011 = vpop.permute.xlu0 %1010
    %v1013 = vmul.f32 %v1006, %v1011
    %1015 = vrot.lane.b32.xlu0 %v1013, 32
    %v1016 = vpop.permute.xlu0 %1015
    %v1018 = vadd.f32 %v1008, %v1016
    %v1019 = vtanh.pop %v1018
    %1021 = vrot.lane.b32.xlu0 %v1019, 64
    %v1022 = vpop.permute.xlu0 %1021
    %v1024 = vmul.f32 %v1006, %v1022
    %v1025 = vsel %vm891, %v1024, %v889
    %v1026 = vsel %vm891, %v1018, %v890
    %vm1027 = vcmp.gt.s32.totalorder %v178, 6
    %s1028 = scalar_lea.vmem [#allocation2], 48
    %v1029 = vld [vmem:[%s1028] sm:$0xff]
    %1030 = vmatpush.bf16.msra.mxu0 0
    %1031 = vmatpush.bf16.msra.mxu0 0
    %1032 = vmatpush.bf16.msra.mxu0 0
    %1033 = vmatpush.bf16.msra.mxu0 0
    %1034 = vmatpush.bf16.msra.mxu0 0
    %1035 = vmatpush.bf16.msra.mxu0 0
    %1036 = vmatpush.bf16.msra.mxu0 %v190
    %1037 = vmatpush.bf16.msra.mxu0 %v189
    %1038 = vmatmul.bf16.gmra.mxu0 %v972
    %v1039 = vpop.f32.mrf.mxu0
    %v1040 = vadd.f32 0.0, %v1039
    %v1041 = vpop.f32.mrf.mxu0
    %1042 = vdwg.mxu0
    %v1043 = vadd.f32 %v1029, %v1040
    %v1044 = vxor.u32 %v1043, 2147483648
    %v1045 = vmul.f32 %v1044, 1.442695
    %v1046 = vpow.pop %v1045
    %v1047 = vadd.f32 %v1046, 1.0
    %v1048 = vrcp.pop %v1047
    %v1049 = vmul.f32 %v1047, %v1048
    %v1050 = vsub.f32 1.0, %v1049
    %v1051 = vmul.f32 %v1048, %v1050
    %v1052 = vadd.f32 %v1048, %v1051
    %vm1053 = vweird.f32 %v1047
    %vm1054 = vweird.f32 %v1048
    %vm1055 = vmor %vm1053, %vm1054
    %v1056 = vsel %vm1055, %v1048, %v1052
    %v1057 = vand.u32 2147483647, %v1047
    %vm1058 = vcmp.eq.f32.partialorder %v1057, 8.507059e+37
    %v1059 = vand.u32 %v1047, 2147483648
    %v1060 = vor.u32 1.1754944e-38, %v1059
    %v1061 = vsel %vm1058, %v1060, %v1056
    %v1062 = vmul.f32 1.0, %v1061
    %v1063 = vtanh.pop %v1043
    %v1064 = vmul.f32 %v1062, %v946
    %1066 = vrot.lane.b32.xlu0 %v1063, 64
    %v1067 = vpop.permute.xlu0 %1066
    %v1069 = vmul.f32 %v1062, %v1067
    %1071 = vrot.lane.b32.xlu0 %v1069, 32
    %v1072 = vpop.permute.xlu0 %1071
    %v1074 = vadd.f32 %v1064, %v1072
    %v1075 = vtanh.pop %v1074
    %1077 = vrot.lane.b32.xlu0 %v1075, 64
    %v1078 = vpop.permute.xlu0 %1077
    %v1080 = vmul.f32 %v1062, %v1078
    %v1081 = vsel %vm1027, %v1080, %v945
    %v1082 = vsel %vm1027, %v1074, %v946
    %v1083 = vpack.c.bf16 %v1081, %v1081
    %v1084 = vpack.c.bf16 %v1025, %v1025
    %1086 = vrot.lane.b32.xlu0 %v1084, 32
    %v1087 = vpop.permute.xlu0 %1086
    %v1089 = vsel %vm193, %v1087, 0
    %1091 = vmatpush.bf16.msra.mxu0 0
    %1092 = vmatpush.bf16.msra.mxu0 0
    %1093 = vmatpush.bf16.msra.mxu0 0
    %1094 = vmatpush.bf16.msra.mxu0 0
    %1095 = vmatpush.bf16.msra.mxu0 0
    %1096 = vmatpush.bf16.msra.mxu0 0
    %1097 = vmatpush.bf16.msra.mxu0 %v260
    %1098 = vmatpush.bf16.msra.mxu0 %v259
    %1099 = vmatmul.bf16.gmra.mxu0 %v1089
    %v1100 = vpop.f32.mrf.mxu0
    %v1101 = vadd.f32 0.0, %v1100
    %v1102 = vpop.f32.mrf.mxu0
    %1103 = vdwg.mxu0
    %1105 = vrot.lane.b32.xlu0 %v1083, 32
    %v1106 = vpop.permute.xlu0 %1105
    %v1108 = vsel %vm193, %v1106, 0
    %1110 = vmatpush.bf16.msra.mxu0 0
    %1111 = vmatpush.bf16.msra.mxu0 0
    %1112 = vmatpush.bf16.msra.mxu0 0
    %1113 = vmatpush.bf16.msra.mxu0 0
    %1114 = vmatpush.bf16.msra.mxu0 0
    %1115 = vmatpush.bf16.msra.mxu0 0
    %1116 = vmatpush.bf16.msra.mxu0 %v288
    %1117 = vmatpush.bf16.msra.mxu0 %v287
    %1118 = vmatmul.bf16.gmra.mxu0 %v1108
    %v1119 = vpop.f32.mrf.mxu0
    %v1120 = vadd.f32 %v1101, %v1119
    %v1121 = vpop.f32.mrf.mxu0
    %1122 = vdwg.mxu0
    %v1123 = vadd.f32 %v1120, %v173
    %v1124 = vxor.u32 %v1123, 2147483648
    %v1125 = vmul.f32 %v1124, 1.442695
    %v1126 = vpow.pop %v1125
    %v1127 = vadd.f32 %v1126, 1.0
    %v1128 = vrcp.pop %v1127
    %v1129 = vmul.f32 %v1127, %v1128
    %v1130 = vsub.f32 1.0, %v1129
    %v1131 = vmul.f32 %v1128, %v1130
    %v1132 = vadd.f32 %v1128, %v1131
    %vm1133 = vweird.f32 %v1127
    %vm1134 = vweird.f32 %v1128
    %vm1135 = vmor %vm1133, %vm1134
    %v1136 = vsel %vm1135, %v1128, %v1132
    %v1137 = vand.u32 2147483647, %v1127
    %vm1138 = vcmp.eq.f32.partialorder %v1137, 8.507059e+37
    %v1139 = vand.u32 %v1127, 2147483648
    %v1140 = vor.u32 1.1754944e-38, %v1139
    %v1141 = vsel %vm1138, %v1140, %v1136
    %v1142 = vmul.f32 1.0, %v1141
    %v1143 = vtanh.pop %v1123
    %v1144 = vmul.f32 %v1142, %v1026
    %1146 = vrot.lane.b32.xlu0 %v1143, 64
    %v1147 = vpop.permute.xlu0 %1146
    %v1149 = vmul.f32 %v1142, %v1147
    %1151 = vrot.lane.b32.xlu0 %v1149, 32
    %v1152 = vpop.permute.xlu0 %1151
    %v1154 = vadd.f32 %v1144, %v1152
    %v1155 = vtanh.pop %v1154
    %1157 = vrot.lane.b32.xlu0 %v1155, 64
    %v1158 = vpop.permute.xlu0 %1157
    %v1160 = vmul.f32 %v1142, %v1158
    %v1161 = vsel %vm1027, %v1160, %v1025
    %v1162 = vsel %vm1027, %v1154, %v1026
    %vm1163 = vcmp.gt.s32.totalorder %v178, 7
    %s1164 = scalar_lea.vmem [#allocation2], 56
    %v1165 = vld [vmem:[%s1164] sm:$0xff]
    %1166 = vmatpush.bf16.msra.mxu0 0
    %1167 = vmatpush.bf16.msra.mxu0 0
    %1168 = vmatpush.bf16.msra.mxu0 0
    %1169 = vmatpush.bf16.msra.mxu0 0
    %1170 = vmatpush.bf16.msra.mxu0 0
    %1171 = vmatpush.bf16.msra.mxu0 0
    %1172 = vmatpush.bf16.msra.mxu0 %v190
    %1173 = vmatpush.bf16.msra.mxu0 %v189
    %1174 = vmatmul.bf16.gmra.mxu0 %v1108
    %v1175 = vpop.f32.mrf.mxu0
    %v1176 = vadd.f32 0.0, %v1175
    %v1177 = vpop.f32.mrf.mxu0
    %1178 = vdwg.mxu0
    %v1179 = vadd.f32 %v1165, %v1176
    %v1180 = vxor.u32 %v1179, 2147483648
    %v1181 = vmul.f32 %v1180, 1.442695
    %v1182 = vpow.pop %v1181
    %v1183 = vadd.f32 %v1182, 1.0
    %v1184 = vrcp.pop %v1183
    %v1185 = vmul.f32 %v1183, %v1184
    %v1186 = vsub.f32 1.0, %v1185
    %v1187 = vmul.f32 %v1184, %v1186
    %v1188 = vadd.f32 %v1184, %v1187
    %vm1189 = vweird.f32 %v1183
    %vm1190 = vweird.f32 %v1184
    %vm1191 = vmor %vm1189, %vm1190
    %v1192 = vsel %vm1191, %v1184, %v1188
    %v1193 = vand.u32 2147483647, %v1183
    %vm1194 = vcmp.eq.f32.partialorder %v1193, 8.507059e+37
    %v1195 = vand.u32 %v1183, 2147483648
    %v1196 = vor.u32 1.1754944e-38, %v1195
    %v1197 = vsel %vm1194, %v1196, %v1192
    %v1198 = vmul.f32 1.0, %v1197
    %v1199 = vtanh.pop %v1179
    %v1200 = vmul.f32 %v1198, %v1082
    %1202 = vrot.lane.b32.xlu0 %v1199, 64
    %v1203 = vpop.permute.xlu0 %1202
    %v1205 = vmul.f32 %v1198, %v1203
    %1207 = vrot.lane.b32.xlu0 %v1205, 32
    %v1208 = vpop.permute.xlu0 %1207
    %v1210 = vadd.f32 %v1200, %v1208
    %v1211 = vtanh.pop %v1210
    %1213 = vrot.lane.b32.xlu0 %v1211, 64
    %v1214 = vpop.permute.xlu0 %1213
    %v1216 = vmul.f32 %v1198, %v1214
    %v1217 = vsel %vm1163, %v1216, %v1081
    %v1218 = vpack.c.bf16 %v1217, %v1217
    %v1219 = vpack.c.bf16 %v1161, %v1161
    %1221 = vrot.lane.b32.xlu0 %v1219, 32
    %v1222 = vpop.permute.xlu0 %1221
    %v1224 = vsel %vm193, %v1222, 0
    %1226 = vmatpush.bf16.msra.mxu0 0
    %1227 = vmatpush.bf16.msra.mxu0 0
    %1228 = vmatpush.bf16.msra.mxu0 0
    %1229 = vmatpush.bf16.msra.mxu0 0
    %1230 = vmatpush.bf16.msra.mxu0 0
    %1231 = vmatpush.bf16.msra.mxu0 0
    %1232 = vmatpush.bf16.msra.mxu0 %v260
    %1233 = vmatpush.bf16.msra.mxu0 %v259
    %1234 = vmatmul.bf16.gmra.mxu0 %v1224
    %v1235 = vpop.f32.mrf.mxu0
    %v1236 = vadd.f32 0.0, %v1235
    %v1237 = vpop.f32.mrf.mxu0
    %1238 = vdwg.mxu0
    %1240 = vrot.lane.b32.xlu0 %v1218, 32
    %v1241 = vpop.permute.xlu0 %1240
    %v1243 = vsel %vm193, %v1241, 0
    %1245 = vmatpush.bf16.msra.mxu0 0
    %1246 = vmatpush.bf16.msra.mxu0 0
    %1247 = vmatpush.bf16.msra.mxu0 0
    %1248 = vmatpush.bf16.msra.mxu0 0
    %1249 = vmatpush.bf16.msra.mxu0 0
    %1250 = vmatpush.bf16.msra.mxu0 0
    %1251 = vmatpush.bf16.msra.mxu0 %v288
    %1252 = vmatpush.bf16.msra.mxu0 %v287
    %1253 = vmatmul.bf16.gmra.mxu0 %v1243
    %v1254 = vpop.f32.mrf.mxu0
    %v1255 = vadd.f32 %v1236, %v1254
    %v1256 = vpop.f32.mrf.mxu0
    %1257 = vdwg.mxu0
    %v1258 = vadd.f32 %v1255, %v173
    %v1259 = vxor.u32 %v1258, 2147483648
    %v1260 = vmul.f32 %v1259, 1.442695
    %v1261 = vpow.pop %v1260
    %v1262 = vadd.f32 %v1261, 1.0
    %v1263 = vrcp.pop %v1262
    %v1264 = vmul.f32 %v1262, %v1263
    %v1265 = vsub.f32 1.0, %v1264
    %v1266 = vmul.f32 %v1263, %v1265
    %v1267 = vadd.f32 %v1263, %v1266
    %vm1268 = vweird.f32 %v1262
    %vm1269 = vweird.f32 %v1263
    %vm1270 = vmor %vm1268, %vm1269
    %v1271 = vsel %vm1270, %v1263, %v1267
    %v1272 = vand.u32 2147483647, %v1262
    %vm1273 = vcmp.eq.f32.partialorder %v1272, 8.507059e+37
    %v1274 = vand.u32 %v1262, 2147483648
    %v1275 = vor.u32 1.1754944e-38, %v1274
    %v1276 = vsel %vm1273, %v1275, %v1271
    %v1277 = vmul.f32 1.0, %v1276
    %v1278 = vtanh.pop %v1258
    %v1279 = vmul.f32 %v1277, %v1162
    %1281 = vrot.lane.b32.xlu0 %v1278, 64
    %v1282 = vpop.permute.xlu0 %1281
    %v1284 = vmul.f32 %v1277, %v1282
    %1286 = vrot.lane.b32.xlu0 %v1284, 32
    %v1287 = vpop.permute.xlu0 %1286
    %v1289 = vadd.f32 %v1279, %v1287
    %v1290 = vtanh.pop %v1289
    %1292 = vrot.lane.b32.xlu0 %v1290, 64
    %v1293 = vpop.permute.xlu0 %1292
    %v1295 = vmul.f32 %v1277, %v1293
    %v1296 = vsel %vm1163, %v1295, %v1161
    %v1297 = vpack.c.bf16 %v1296, %v1296
    %v1298 = vld [vmem:[#allocation6] sm:$0xf]
    %v1299 = vld [vmem:[#allocation6 + $0x4] sm:$0xf]
    %v1300 = vld [vmem:[#allocation6 + $0x8] sm:$0xf]
    %v1301 = vld [vmem:[#allocation6 + $0xc] sm:$0xf]
    %v1302 = vld [vmem:[%s9] sm:$0x1]
    %v1304 = vperm.slane %v1302, 0
    %1307 = vrot.lane.b32.xlu0 %v1297, 32
    %v1308 = vpop.permute.xlu0 %1307
    %v1313 = vunpack.c.l.b16 %v1298
    %v1314 = vunpack.c.l.b16 %v1299
    %v1315 = vunpack.c.l.b16 %v1300
    %v1316 = vunpack.c.l.b16 %v1301
    %v1317 = vpack.c.b16 %v1314, %v1313
    %v1318 = vpack.c.b16 %v1316, %v1315
    %v1322 = vsel %vm193, %v1308, 0
    %1324 = vmatpush.bf16.msra.mxu0 0
    %1325 = vmatpush.bf16.msra.mxu0 0
    %1326 = vmatpush.bf16.msra.mxu0 0
    %1327 = vmatpush.bf16.msra.mxu0 0
    %1328 = vmatpush.bf16.msra.mxu0 0
    %1329 = vmatpush.bf16.msra.mxu0 0
    %1330 = vmatpush.bf16.msra.mxu0 %v1318
    %1331 = vmatpush.bf16.msra.mxu0 %v1317
    %1332 = vmatmul.bf16.gmra.mxu0 %v1322
    %v1333 = vpop.f32.mrf.mxu0
    %v1334 = vadd.f32 %v1304, %v1333
    %v1335 = vpop.f32.mrf.mxu0
    %1336 = vdwg.mxu0
    %1337 = vst [vmem:[#allocation8] sm:$0xff] %v1334
    // Predicated region
    $region50: #{tpu_custom_call.1} parent=1 // pred_check
      _
    $region51: #{tpu_custom_call.1} parent=1 // pred_check_branch
      %1339 = sbr.rel (0) target = $region53
    $region52: #{tpu_custom_call.1} parent=1 // pred_region
      %1341 = vsyncadd [#allocation5], 0
      %s1343 = sshll.u32 [#allocation8], 4
      %s1344 = int_to_ptr.vmem [resolvable:$true] %s1343
      %s1345 = sshll.u32 %s10, 4
      %s1346 = int_to_ptr.hbm [resolvable:$true] %s1345
      %1348 = dma.vmem_to_hbm [thread:$0]  %s1344, 128, %s1346, [#allocation5]
    $region53: #{tpu_custom_call.1} parent=1 // pred_fallthru
      _
    // Predicated region
    $region54: #{tpu_custom_call.1} parent=1 // pred_check
      _
    $region55: #{tpu_custom_call.1} parent=1 // pred_check_branch
      %1350 = sbr.rel (0) target = $region57
    $region56: #{tpu_custom_call.1} parent=1 // pred_region
      %1352 = dma.done [#allocation5], 128
    $region57: #{tpu_custom_call.1} parent=1 // pred_fallthru
      _
    %1353 = vsyncpa [#allocation4], 1
    %1354 = vsyncpa [#allocation7], 1
    %1355 = vsyncpa [#allocation5], 1

</llo_original>
